<compile_context>
chip_gen: v7x
topology: tpu7x:2x2x1
jax: 0.10.0
libtpu: 0.0.40
codegen_flags: <defaults>
</compile_context>

<pallas_src>
import functools

import jax
import jax.numpy as jnp
from jax.experimental import pallas as pl
from jax.experimental.pallas import tpu as pltpu


# ------------------------------- helpers --------------------------------------

def _round_up(x, m):
    return ((x + m - 1) // m) * m


def _pad_hidden_last(w, num_heads, d, d_pad):
    """Pad a trailing hidden axis (H*d) to (H*d_pad), zero-padding each head."""
    lead = w.shape[:-1]
    w = w.reshape(lead + (num_heads, d))
    w = jnp.pad(w, [(0, 0)] * (len(lead) + 1) + [(0, d_pad - d)])
    return w.reshape(lead + (num_heads * d_pad,))


def _pad_hidden_first(w, num_heads, d, d_pad):
    """Pad a leading hidden axis (H*d) to (H*d_pad), zero-padding each head."""
    trail = w.shape[1:]
    w = w.reshape((num_heads, d) + trail)
    w = jnp.pad(w, [(0, 0), (0, d_pad - d)] + [(0, 0)] * len(trail))
    return w.reshape((num_heads * d_pad,) + trail)


# ----------------------------- fused layer kernel ------------------------------

def _rgat_layer_kernel(*refs, num_heads, d_pad, tile_dst, fuse_mlp):
    if fuse_mlp:
        (x_ref, adj_ref, fcw_ref, alf_ref, arf_ref, skw_ref, bias_ref,
         bnsc_ref, bnsh_ref, w1_ref, b1_ref, m_sc_ref, m_sh_ref, w2_ref,
         b2_ref, o_ref, acc_ref) = refs
    else:
        (x_ref, adj_ref, fcw_ref, alf_ref, arf_ref, skw_ref, bias_ref,
         bnsc_ref, bnsh_ref, o_ref, acc_ref) = refs

    H, Dp, T = num_heads, d_pad, tile_dst
    e = pl.program_id(1)
    last_e = pl.num_programs(1) - 1
    row0 = pl.multiple_of(pl.program_id(0) * T, T)

    # MFG contract: dst nodes are the prefix of the src ordering, so the dst
    # tile's features are simply a row slice of x (no second projection).
    x_bf = x_ref[...]                               # (S, cin) bf16
    xd_bf = x_ref[pl.ds(row0, T), :]                # (T, cin) bf16

    # e == 0: init accumulator with skip Linear + folded biases (skip bias +
    # the E GATConv biases).
    @pl.when(e == 0)
    def _():
        acc_ref[...] = (jnp.dot(xd_bf, skw_ref[...],
                                preferred_element_type=jnp.float32)
                        + bias_ref[...])

    # ----- per-etype GATConv (this grid step handles one etype) -----
    # fc on all source nodes: one lane-dense (128-wide, head-padded) matmul.
    fs = jnp.dot(x_bf, fcw_ref[0], preferred_element_type=jnp.float32)   # (S, hid_pad)
    fs_bf = fs.astype(jnp.bfloat16)

    # Attention logits from attention vectors pre-folded through fc
    # (el = x @ (fc @ a_l), er = x_dst @ (fc @ a_r)) -- no dst re-projection.
    el = jax.lax.dot_general(alf_ref[0], x_bf, (((1,), (1,)), ((), ())),
                             preferred_element_type=jnp.float32)          # (H, S)
    er = jnp.dot(xd_bf, arf_ref[0], preferred_element_type=jnp.float32)   # (T, H)

    mask = adj_ref[0] > 0                           # (T, S) bool, single compare

    neg = jnp.float32(-1e30)   # safe only because softmax math stays in f32
    head_outs = []
    has_edge = None
    for h in range(H):                              # static unroll, H is small
        logits = er[:, h:h + 1] + el[h:h + 1, :]    # (T, S) via broadcast
        logits = jnp.maximum(logits, 0.2 * logits)  # LeakyReLU(0.2)
        logits = jnp.where(mask, logits, neg)
        mx = jnp.max(logits, axis=-1, keepdims=True)
        if h == 0:
            # allow_zero_in_degree=True: rows without edges of this etype -> 0.
            has_edge = mx > -1e29
        p = jnp.exp(logits - mx)
        denom = jnp.sum(p, axis=-1, keepdims=True)
        # approx reciprocal (EUP slot): ~2^-12 rel. error, OK for inference.
        alpha = (p * pl.reciprocal(denom, approx=True)).astype(jnp.bfloat16)
        # Head h's alpha only multiplies head h's feature columns.
        head_outs.append(jnp.dot(alpha, fs_bf[:, h * Dp:(h + 1) * Dp],
                                 preferred_element_type=jnp.float32))
    contrib = jnp.concatenate(head_outs, axis=-1)   # (T, hid_pad)
    acc_ref[...] += jnp.where(has_edge, contrib, 0.0)

    # e == last: eval BatchNorm1d + ELU (+ fused MLP head), one lane-dense store.
    @pl.when(e == last_e)
    def _():
        y = acc_ref[...] * bnsc_ref[...] + bnsh_ref[...]
        y = jnp.where(y > 0.0, y, jnp.exp(jnp.minimum(y, 0.0)) - 1.0)   # ELU
        # Dropout: identity in eval mode.
        if fuse_mlp:
            h1 = jnp.dot(y.astype(jnp.bfloat16), w1_ref[...],
                         preferred_element_type=jnp.float32) + b1_ref[...]
            h1 = jnp.maximum(h1 * m_sc_ref[...] + m_sh_ref[...], 0.0)   # BN+ReLU
            o_ref[...] = (jnp.dot(h1.astype(jnp.bfloat16), w2_ref[...],
                                  preferred_element_type=jnp.float32)
                          + b2_ref[...])
        else:
            o_ref[...] = y.astype(o_ref.dtype)      # bf16, 128-wide unmasked store


def rgat_layer(x, adj, fc_w, attn_l, attn_r, skip_w, bias, bn_scale, bn_shift,
               *, num_heads, mlp=None):
    n_src, cin = x.shape
    num_etypes, n_dst, n_src2 = adj.shape
    assert n_src2 == n_src
    hid_pad = fc_w.shape[-1]
    assert hid_pad % num_heads == 0
    d_pad = hid_pad // num_heads

    # dst tiling ("parallel" grid axis). TODO(synk): for compute-bound shapes
    # on v7x, shrink the tile so this axis has >= 2 iterations (2 TCs/chip).
    tile = n_dst if n_dst <= 128 else 128
    assert n_dst % tile == 0
    grid = (n_dst // tile, num_etypes)              # etype axis last (reduction)

    fuse_mlp = mlp is not None
    kern = functools.partial(_rgat_layer_kernel, num_heads=num_heads,
                             d_pad=d_pad, tile_dst=tile, fuse_mlp=fuse_mlp)

    in_specs = [
        pl.BlockSpec((n_src, cin), lambda i, e: (0, 0)),             # x (bf16)
        pl.BlockSpec((1, tile, n_src), lambda i, e: (e, i, 0)),      # adj (streamed)
        pl.BlockSpec((1, cin, hid_pad), lambda i, e: (e, 0, 0)),     # fc_w (streamed)
        pl.BlockSpec((1, num_heads, cin), lambda i, e: (e, 0, 0)),   # folded attn_l
        pl.BlockSpec((1, cin, num_heads), lambda i, e: (e, 0, 0)),   # folded attn_r
        pl.BlockSpec((cin, hid_pad), lambda i, e: (0, 0)),           # skip_w
        pl.BlockSpec((1, hid_pad), lambda i, e: (0, 0)),             # bias (folded)
        pl.BlockSpec((1, hid_pad), lambda i, e: (0, 0)),             # bn scale
        pl.BlockSpec((1, hid_pad), lambda i, e: (0, 0)),             # bn shift
    ]
    args = [x, adj, fc_w, attn_l, attn_r, skip_w, bias, bn_scale, bn_shift]

    if fuse_mlp:
        dout_pad = mlp["w2"].shape[-1]
        in_specs += [
            pl.BlockSpec((hid_pad, hid_pad), lambda i, e: (0, 0)),   # mlp w1
            pl.BlockSpec((1, hid_pad), lambda i, e: (0, 0)),         # mlp b1
            pl.BlockSpec((1, hid_pad), lambda i, e: (0, 0)),         # mlp bn scale
            pl.BlockSpec((1, hid_pad), lambda i, e: (0, 0)),         # mlp bn shift
            pl.BlockSpec((hid_pad, dout_pad), lambda i, e: (0, 0)),  # mlp w2
            pl.BlockSpec((1, dout_pad), lambda i, e: (0, 0)),        # mlp b2
        ]
        args += [mlp["w1"], mlp["b1"], mlp["bn_scale"], mlp["bn_shift"],
                 mlp["w2"], mlp["b2"]]
        out_w, out_dtype = dout_pad, jnp.float32
    else:
        out_w, out_dtype = hid_pad, jnp.bfloat16

    # Advisory cost estimate.
    flops = (2 * n_dst * cin * hid_pad
             + num_etypes * (2 * n_src * cin * hid_pad
                             + 2 * (n_src + n_dst) * cin * num_heads
                             + 8 * num_heads * n_dst * n_src
                             + 2 * n_dst * n_src * hid_pad))
    if fuse_mlp:
        flops += 2 * n_dst * hid_pad * (hid_pad + out_w)
    transcendentals = num_etypes * num_heads * n_dst * n_src + n_dst * hid_pad
    bytes_accessed = (sum(int(a.size) * a.dtype.itemsize for a in args)
                      + n_dst * out_w * jnp.dtype(out_dtype).itemsize)

    # VMEM limit derived from block sizes (x2 for double buffering) + headroom.
    block_bytes = (sum(int(a.size) * a.dtype.itemsize for a in args)
                   + n_dst * out_w * 4 + tile * hid_pad * 4)
    vmem_limit = int(min(128 * 1024 * 1024, 2 * block_bytes + 32 * 1024 * 1024))

    return pl.pallas_call(
        kern,
        out_shape=jax.ShapeDtypeStruct((n_dst, out_w), out_dtype),
        grid=grid,
        in_specs=in_specs,
        out_specs=pl.BlockSpec((tile, out_w), lambda i, e: (i, 0)),
        scratch_shapes=[pltpu.VMEM((tile, hid_pad), jnp.float32)],
        compiler_params=pltpu.CompilerParams(
            dimension_semantics=("parallel", "arbitrary"),
            vmem_limit_bytes=vmem_limit),
        cost_estimate=pl.CostEstimate(
            flops=int(flops), transcendentals=int(transcendentals),
            bytes_accessed=int(bytes_accessed)),
    )(*args)


# --------------------------- parameters / forward ------------------------------

def init_params(key, in_channels, hidden, out_channels, num_etypes,
                num_layers, num_heads):
    H = num_heads
    D = hidden // H
    hid_pad = _round_up(max(hidden, 128), 128)
    assert hid_pad % H == 0
    Dp = hid_pad // H
    dout_pad = _round_up(max(out_channels, 128), 128)
    eps = 1e-5
    bn_scale_val = (1.0 + eps) ** -0.5   # eval BN: gamma=1, beta=0, mean=0, var=1

    def nrm(k, shape):
        return 0.1 * jax.random.normal(k, shape, jnp.float32)

    layers = []
    for i in range(num_layers):
        cin = in_channels if i == 0 else hidden
        pad_in = i > 0            # input lives in the head-padded hidden layout
        fcs, als, ars = [], [], []
        for _ in range(num_etypes):
            key, k1, k2, k3 = jax.random.split(key, 4)
            W = nrm(k1, (cin, hidden))                 # GATConv.fc (no bias)
            a_l = nrm(k2, (H, D))
            a_r = nrm(k3, (H, D))
            Wh = W.reshape(cin, H, D)
            fl = jnp.einsum('chd,hd->hc', Wh, a_l)     # folded attn_l (H, cin)
            fr = jnp.einsum('chd,hd->ch', Wh, a_r)     # folded attn_r (cin, H)
            Wp = _pad_hidden_last(W, H, D, Dp)
            if pad_in:
                Wp = _pad_hidden_first(Wp, H, D, Dp)
                fl = _pad_hidden_last(fl, H, D, Dp)
                fr = _pad_hidden_first(fr, H, D, Dp)
            fcs.append(Wp); als.append(fl); ars.append(fr)
        key, ks = jax.random.split(key)
        SW = _pad_hidden_last(nrm(ks, (cin, hidden)), H, D, Dp)
        if pad_in:
            SW = _pad_hidden_first(SW, H, D, Dp)
        bn_scale = _pad_hidden_last(
            jnp.full((1, hidden), bn_scale_val, jnp.float32), H, D, Dp)
        layers.append(dict(
            fc_w=jnp.stack(fcs).astype(jnp.bfloat16),       # (E, cin_p, hid_pad)
            attn_l=jnp.stack(als).astype(jnp.bfloat16),     # (E, H, cin_p)
            attn_r=jnp.stack(ars).astype(jnp.bfloat16),     # (E, cin_p, H)
            skip_w=SW.astype(jnp.bfloat16),                 # (cin_p, hid_pad)
            # skip-Linear bias + E GATConv biases (all zero at init), folded.
            bias=jnp.zeros((1, hid_pad), jnp.float32),
            bn_scale=bn_scale,
            bn_shift=jnp.zeros((1, hid_pad), jnp.float32)))

    key, km1, km2 = jax.random.split(key, 3)
    w1 = _pad_hidden_first(nrm(km1, (hidden, hidden)), H, D, Dp)   # rows: padded layout
    w1 = jnp.pad(w1, ((0, 0), (0, hid_pad - hidden)))              # plain column pad
    w2 = jnp.pad(nrm(km2, (hidden, out_channels)),
                 ((0, hid_pad - hidden), (0, dout_pad - out_channels)))
    mlp = dict(
        w1=w1.astype(jnp.bfloat16),
        b1=jnp.zeros((1, hid_pad), jnp.float32),
        bn_scale=jnp.pad(jnp.full((1, hidden), bn_scale_val, jnp.float32),
                         ((0, 0), (0, hid_pad - hidden))),
        bn_shift=jnp.zeros((1, hid_pad), jnp.float32),
        w2=w2.astype(jnp.bfloat16),
        b2=jnp.zeros((1, dout_pad), jnp.float32))
    return dict(layers=layers, mlp=mlp, out_channels=out_channels)


def rgat_forward(params, x, adjs, *, num_heads):
    layers = params["layers"]
    x = x.astype(jnp.bfloat16)   # one-time cast; layer outputs are already bf16
    for i, (layer, adj) in enumerate(zip(layers, adjs)):
        mlp = params["mlp"] if i == len(layers) - 1 else None   # fuse MLP head
        x = rgat_layer(x, adj, layer["fc_w"], layer["attn_l"], layer["attn_r"],
                       layer["skip_w"], layer["bias"], layer["bn_scale"],
                       layer["bn_shift"], num_heads=num_heads, mlp=mlp)
        # dropout: identity in eval mode
    return x[:, :params["out_channels"]]   # strip lane padding from the logits


# ------------------------------------ main -------------------------------------

if __name__ == "__main__":
    in_channels = 16
    hidden_channels = 32
    out_channels = 8
    num_etypes = 2
    num_layers = 2
    num_heads = 4

    key = jax.random.PRNGKey(0)
    key, kx = jax.random.split(key)
    params = init_params(key, in_channels, hidden_channels, out_channels,
                         num_etypes, num_layers, num_heads)

    # MFG sizes: layer0 src=24 -> dst=16, layer1 src=16 -> dst=8
    # (dst nodes are the prefix of the src node ordering).
    n_nodes = [24, 16, 8]
    x = jax.random.normal(kx, (n_nodes[0], in_channels), jnp.float32)

    adjs = []
    for i in range(num_layers):
        key, ka = jax.random.split(key)
        mask = (jax.random.uniform(
            ka, (num_etypes, n_nodes[i + 1], n_nodes[i])) < 0.3)
        adjs.append(mask.astype(jnp.bfloat16))   # bf16 0/1 adjacency mask

    out = rgat_forward(params, x, adjs, num_heads=num_heads)
    out = jax.block_until_ready(out)
    assert out.shape == (n_nodes[-1], out_channels), out.shape
    assert bool(jnp.all(jnp.isfinite(out)))
    print("KERNEL_OK")
</pallas_src>

<mosaic_0001>
module attributes {stable_mosaic.version = 11 : i64} {
  func.func @_rgat_layer_kernel(%arg0: i32, %arg1: i32, %arg2: memref<24x16xbf16, #tpu.memory_space<vmem>>, %arg3: memref<1x16x24xbf16, #tpu.memory_space<vmem>>, %arg4: memref<1x16x128xbf16, #tpu.memory_space<vmem>>, %arg5: memref<1x4x16xbf16, #tpu.memory_space<vmem>>, %arg6: memref<1x16x4xbf16, #tpu.memory_space<vmem>>, %arg7: memref<16x128xbf16, #tpu.memory_space<vmem>>, %arg8: memref<1x128xf32, #tpu.memory_space<vmem>>, %arg9: memref<1x128xf32, #tpu.memory_space<vmem>>, %arg10: memref<1x128xf32, #tpu.memory_space<vmem>>, %arg11: memref<16x128xbf16, #tpu.memory_space<vmem>>, %arg12: memref<16x128xf32, #tpu.memory_space<vmem>>) attributes {dimension_semantics = [#tpu.dimension_semantics<parallel>, #tpu.dimension_semantics<arbitrary>], iteration_bounds = array<i64: 1, 2>, scalar_prefetch = 0 : i64, scratch_operands = 1 : i64, tpu.core_type = #tpu.core_type<tc>, window_params = [{pipeline_mode = #tpu.pipeline_mode<synchronous>, transform_indices = @transform_0, window_bounds = array<i64: 24, 16>}, {transform_indices = @transform_1, window_bounds = array<i64: 1, 16, 24>}, {transform_indices = @transform_2, window_bounds = array<i64: 1, 16, 128>}, {transform_indices = @transform_3, window_bounds = array<i64: 1, 4, 16>}, {transform_indices = @transform_4, window_bounds = array<i64: 1, 16, 4>}, {pipeline_mode = #tpu.pipeline_mode<synchronous>, transform_indices = @transform_5, window_bounds = array<i64: 16, 128>}, {pipeline_mode = #tpu.pipeline_mode<synchronous>, transform_indices = @transform_6, window_bounds = array<i64: 1, 128>}, {pipeline_mode = #tpu.pipeline_mode<synchronous>, transform_indices = @transform_7, window_bounds = array<i64: 1, 128>}, {pipeline_mode = #tpu.pipeline_mode<synchronous>, transform_indices = @transform_8, window_bounds = array<i64: 1, 128>}, {transform_indices = @transform_9, window_bounds = array<i64: 16, 128>}]} {
    %c16_i32 = arith.constant 16 : i32
    %0 = arith.muli %arg0, %c16_i32 : i32
    %1 = tpu.assume_multiple %0, 16 : i32
    %c0 = arith.constant 0 : index
    %c0_0 = arith.constant 0 : index
    %2 = vector.load %arg2[%c0, %c0_0] : memref<24x16xbf16, #tpu.memory_space<vmem>>, vector<24x16xbf16>
    %3 = arith.index_cast %1 : i32 to index
    %c0_1 = arith.constant 0 : index
    %4 = vector.load %arg2[%3, %c0_1] : memref<24x16xbf16, #tpu.memory_space<vmem>>, vector<16x16xbf16>
    %c0_i32 = arith.constant 0 : i32
    %5 = arith.cmpi eq, %arg1, %c0_i32 : i32
    %6 = arith.extui %5 : i1 to i32
    %c0_i32_2 = arith.constant 0 : i32
    %7 = arith.cmpi ne, %6, %c0_i32_2 : i32
    scf.if %7 {
      %c0_45 = arith.constant 0 : index
      %c0_46 = arith.constant 0 : index
      %127 = vector.load %arg7[%c0_45, %c0_46] : memref<16x128xbf16, #tpu.memory_space<vmem>>, vector<16x128xbf16>
      %cst_47 = arith.constant dense<0.000000e+00> : vector<16x128xf32>
      %128 = tpu.matmul %4, %127, %cst_47 {dimension_numbers = #tpu.dot_dimension_numbers<[1], [0], [0], [1], [0, 0, 1, 1], [], []>} : vector<16x16xbf16>, vector<16x128xbf16>, vector<16x128xf32> -> vector<16x128xf32>
      %c0_48 = arith.constant 0 : index
      %c0_49 = arith.constant 0 : index
      %129 = vector.load %arg8[%c0_48, %c0_49] : memref<1x128xf32, #tpu.memory_space<vmem>>, vector<1x128xf32>
      %130 = vector.broadcast %129 : vector<1x128xf32> to vector<16x128xf32>
      %131 = arith.addf %128, %130 : vector<16x128xf32>
      %c0_50 = arith.constant 0 : index
      %c0_51 = arith.constant 0 : index
      %132 = vector.load %arg12[%c0_50, %c0_51] : memref<16x128xf32, #tpu.memory_space<vmem>>, vector<16x128xf32>
      tpu.vector_store %arg12[%c0_50, %c0_51], %131 {strides = array<i32>} : memref<16x128xf32, #tpu.memory_space<vmem>>, vector<16x128xf32>,
    } else {
    }
    %c0_3 = arith.constant 0 : index
    %c0_4 = arith.constant 0 : index
    %c0_5 = arith.constant 0 : index
    %8 = vector.load %arg4[%c0_3, %c0_4, %c0_5] : memref<1x16x128xbf16, #tpu.memory_space<vmem>>, vector<1x16x128xbf16>
    %9 = vector.shape_cast %8 : vector<1x16x128xbf16> to vector<16x128xbf16>
    %cst = arith.constant dense<0.000000e+00> : vector<24x128xf32>
    %10 = tpu.matmul %2, %9, %cst {dimension_numbers = #tpu.dot_dimension_numbers<[1], [0], [0], [1], [0, 0, 1, 1], [], []>} : vector<24x16xbf16>, vector<16x128xbf16>, vector<24x128xf32> -> vector<24x128xf32>
    %11 = arith.truncf %10 : vector<24x128xf32> to vector<24x128xbf16>
    %c0_6 = arith.constant 0 : index
    %c0_7 = arith.constant 0 : index
    %c0_8 = arith.constant 0 : index
    %12 = vector.load %arg5[%c0_6, %c0_7, %c0_8] : memref<1x4x16xbf16, #tpu.memory_space<vmem>>, vector<1x4x16xbf16>
    %13 = vector.shape_cast %12 : vector<1x4x16xbf16> to vector<4x16xbf16>
    %cst_9 = arith.constant dense<0.000000e+00> : vector<4x24xf32>
    %14 = tpu.matmul %13, %2, %cst_9 {dimension_numbers = #tpu.dot_dimension_numbers<[1], [1], [0], [0], [0, 0, 1, 0], [], []>} : vector<4x16xbf16>, vector<24x16xbf16>, vector<4x24xf32> -> vector<4x24xf32>
    %c0_10 = arith.constant 0 : index
    %c0_11 = arith.constant 0 : index
    %c0_12 = arith.constant 0 : index
    %15 = vector.load %arg6[%c0_10, %c0_11, %c0_12] : memref<1x16x4xbf16, #tpu.memory_space<vmem>>, vector<1x16x4xbf16>
    %16 = vector.shape_cast %15 : vector<1x16x4xbf16> to vector<16x4xbf16>
    %cst_13 = arith.constant dense<0.000000e+00> : vector<16x4xf32>
    %17 = tpu.matmul %4, %16, %cst_13 {dimension_numbers = #tpu.dot_dimension_numbers<[1], [0], [0], [1], [0, 0, 1, 1], [], []>} : vector<16x16xbf16>, vector<16x4xbf16>, vector<16x4xf32> -> vector<16x4xf32>
    %c0_14 = arith.constant 0 : index
    %c0_15 = arith.constant 0 : index
    %c0_16 = arith.constant 0 : index
    %18 = vector.load %arg3[%c0_14, %c0_15, %c0_16] : memref<1x16x24xbf16, #tpu.memory_space<vmem>>, vector<1x16x24xbf16>
    %19 = vector.shape_cast %18 : vector<1x16x24xbf16> to vector<16x24xbf16>
    %cst_17 = arith.constant 0.000000e+00 : bf16
    %20 = vector.broadcast %cst_17 : bf16 to vector<16x24xbf16>
    %21 = arith.cmpf ogt, %19, %20 : vector<16x24xbf16>
    %22 = vector.extract_strided_slice %17 {offsets = [0, 0], sizes = [16, 1], strides = [1, 1]} : vector<16x4xf32> to vector<16x1xf32>
    %23 = vector.extract_strided_slice %14 {offsets = [0, 0], sizes = [1, 24], strides = [1, 1]} : vector<4x24xf32> to vector<1x24xf32>
    %24 = vector.broadcast %22 : vector<16x1xf32> to vector<16x24xf32>
    %25 = vector.broadcast %23 : vector<1x24xf32> to vector<16x24xf32>
    %26 = arith.addf %24, %25 : vector<16x24xf32>
    %cst_18 = arith.constant 2.000000e-01 : f32
    %27 = vector.broadcast %cst_18 : f32 to vector<16x24xf32>
    %28 = arith.mulf %27, %26 : vector<16x24xf32>
    %29 = arith.maximumf %26, %28 : vector<16x24xf32>
    %cst_19 = arith.constant -1.000000e+30 : f32
    %30 = vector.broadcast %cst_19 : f32 to vector<16x24xf32>
    %31 = arith.select %21, %29, %30 : vector<16x24xi1>, vector<16x24xf32>
    %cst_20 = arith.constant dense<0xFF800000> : vector<16xf32>
    %32 = vector.multi_reduction <maximumf>, %31, %cst_20 [1] : vector<16x24xf32> to vector<16xf32>
    %33 = vector.shape_cast %32 : vector<16xf32> to vector<16x1xf32>
    %cst_21 = arith.constant -1.000000e+29 : f32
    %34 = vector.broadcast %cst_21 : f32 to vector<16x1xf32>
    %35 = arith.cmpf ogt, %33, %34 : vector<16x1xf32>
    %36 = vector.broadcast %33 : vector<16x1xf32> to vector<16x24xf32>
    %37 = arith.subf %31, %36 : vector<16x24xf32>
    %38 = math.exp %37 : vector<16x24xf32>
    %cst_22 = arith.constant dense<0.000000e+00> : vector<16xf32>
    %39 = vector.multi_reduction <add>, %38, %cst_22 [1] : vector<16x24xf32> to vector<16xf32>
    %40 = vector.shape_cast %39 : vector<16xf32> to vector<16x1xf32>
    %41 = tpu.reciprocal %40 {approx = true} : vector<16x1xf32> -> vector<16x1xf32>
    %42 = vector.broadcast %41 : vector<16x1xf32> to vector<16x24xf32>
    %43 = arith.mulf %38, %42 : vector<16x24xf32>
    %44 = arith.truncf %43 : vector<16x24xf32> to vector<16x24xbf16>
    %45 = vector.extract_strided_slice %11 {offsets = [0, 0], sizes = [24, 32], strides = [1, 1]} : vector<24x128xbf16> to vector<24x32xbf16>
    %cst_23 = arith.constant dense<0.000000e+00> : vector<16x32xf32>
    %46 = tpu.matmul %44, %45, %cst_23 {dimension_numbers = #tpu.dot_dimension_numbers<[1], [0], [0], [1], [0, 0, 1, 1], [], []>} : vector<16x24xbf16>, vector<24x32xbf16>, vector<16x32xf32> -> vector<16x32xf32>
    %47 = vector.extract_strided_slice %17 {offsets = [0, 1], sizes = [16, 1], strides = [1, 1]} : vector<16x4xf32> to vector<16x1xf32>
    %48 = vector.extract_strided_slice %14 {offsets = [1, 0], sizes = [1, 24], strides = [1, 1]} : vector<4x24xf32> to vector<1x24xf32>
    %49 = vector.broadcast %47 : vector<16x1xf32> to vector<16x24xf32>
    %50 = vector.broadcast %48 : vector<1x24xf32> to vector<16x24xf32>
    %51 = arith.addf %49, %50 : vector<16x24xf32>
    %cst_24 = arith.constant 2.000000e-01 : f32
    %52 = vector.broadcast %cst_24 : f32 to vector<16x24xf32>
    %53 = arith.mulf %52, %51 : vector<16x24xf32>
    %54 = arith.maximumf %51, %53 : vector<16x24xf32>
    %cst_25 = arith.constant -1.000000e+30 : f32
    %55 = vector.broadcast %cst_25 : f32 to vector<16x24xf32>
    %56 = arith.select %21, %54, %55 : vector<16x24xi1>, vector<16x24xf32>
    %cst_26 = arith.constant dense<0xFF800000> : vector<16xf32>
    %57 = vector.multi_reduction <maximumf>, %56, %cst_26 [1] : vector<16x24xf32> to vector<16xf32>
    %58 = vector.shape_cast %57 : vector<16xf32> to vector<16x1xf32>
    %59 = vector.broadcast %58 : vector<16x1xf32> to vector<16x24xf32>
    %60 = arith.subf %56, %59 : vector<16x24xf32>
    %61 = math.exp %60 : vector<16x24xf32>
    %cst_27 = arith.constant dense<0.000000e+00> : vector<16xf32>
    %62 = vector.multi_reduction <add>, %61, %cst_27 [1] : vector<16x24xf32> to vector<16xf32>
    %63 = vector.shape_cast %62 : vector<16xf32> to vector<16x1xf32>
    %64 = tpu.reciprocal %63 {approx = true} : vector<16x1xf32> -> vector<16x1xf32>
    %65 = vector.broadcast %64 : vector<16x1xf32> to vector<16x24xf32>
    %66 = arith.mulf %61, %65 : vector<16x24xf32>
    %67 = arith.truncf %66 : vector<16x24xf32> to vector<16x24xbf16>
    %68 = vector.extract_strided_slice %11 {offsets = [0, 32], sizes = [24, 32], strides = [1, 1]} : vector<24x128xbf16> to vector<24x32xbf16>
    %cst_28 = arith.constant dense<0.000000e+00> : vector<16x32xf32>
    %69 = tpu.matmul %67, %68, %cst_28 {dimension_numbers = #tpu.dot_dimension_numbers<[1], [0], [0], [1], [0, 0, 1, 1], [], []>} : vector<16x24xbf16>, vector<24x32xbf16>, vector<16x32xf32> -> vector<16x32xf32>
    %70 = vector.extract_strided_slice %17 {offsets = [0, 2], sizes = [16, 1], strides = [1, 1]} : vector<16x4xf32> to vector<16x1xf32>
    %71 = vector.extract_strided_slice %14 {offsets = [2, 0], sizes = [1, 24], strides = [1, 1]} : vector<4x24xf32> to vector<1x24xf32>
    %72 = vector.broadcast %70 : vector<16x1xf32> to vector<16x24xf32>
    %73 = vector.broadcast %71 : vector<1x24xf32> to vector<16x24xf32>
    %74 = arith.addf %72, %73 : vector<16x24xf32>
    %cst_29 = arith.constant 2.000000e-01 : f32
    %75 = vector.broadcast %cst_29 : f32 to vector<16x24xf32>
    %76 = arith.mulf %75, %74 : vector<16x24xf32>
    %77 = arith.maximumf %74, %76 : vector<16x24xf32>
    %cst_30 = arith.constant -1.000000e+30 : f32
    %78 = vector.broadcast %cst_30 : f32 to vector<16x24xf32>
    %79 = arith.select %21, %77, %78 : vector<16x24xi1>, vector<16x24xf32>
    %cst_31 = arith.constant dense<0xFF800000> : vector<16xf32>
    %80 = vector.multi_reduction <maximumf>, %79, %cst_31 [1] : vector<16x24xf32> to vector<16xf32>
    %81 = vector.shape_cast %80 : vector<16xf32> to vector<16x1xf32>
    %82 = vector.broadcast %81 : vector<16x1xf32> to vector<16x24xf32>
    %83 = arith.subf %79, %82 : vector<16x24xf32>
    %84 = math.exp %83 : vector<16x24xf32>
    %cst_32 = arith.constant dense<0.000000e+00> : vector<16xf32>
    %85 = vector.multi_reduction <add>, %84, %cst_32 [1] : vector<16x24xf32> to vector<16xf32>
    %86 = vector.shape_cast %85 : vector<16xf32> to vector<16x1xf32>
    %87 = tpu.reciprocal %86 {approx = true} : vector<16x1xf32> -> vector<16x1xf32>
    %88 = vector.broadcast %87 : vector<16x1xf32> to vector<16x24xf32>
    %89 = arith.mulf %84, %88 : vector<16x24xf32>
    %90 = arith.truncf %89 : vector<16x24xf32> to vector<16x24xbf16>
    %91 = vector.extract_strided_slice %11 {offsets = [0, 64], sizes = [24, 32], strides = [1, 1]} : vector<24x128xbf16> to vector<24x32xbf16>
    %cst_33 = arith.constant dense<0.000000e+00> : vector<16x32xf32>
    %92 = tpu.matmul %90, %91, %cst_33 {dimension_numbers = #tpu.dot_dimension_numbers<[1], [0], [0], [1], [0, 0, 1, 1], [], []>} : vector<16x24xbf16>, vector<24x32xbf16>, vector<16x32xf32> -> vector<16x32xf32>
    %93 = vector.extract_strided_slice %17 {offsets = [0, 3], sizes = [16, 1], strides = [1, 1]} : vector<16x4xf32> to vector<16x1xf32>
    %94 = vector.extract_strided_slice %14 {offsets = [3, 0], sizes = [1, 24], strides = [1, 1]} : vector<4x24xf32> to vector<1x24xf32>
    %95 = vector.broadcast %93 : vector<16x1xf32> to vector<16x24xf32>
    %96 = vector.broadcast %94 : vector<1x24xf32> to vector<16x24xf32>
    %97 = arith.addf %95, %96 : vector<16x24xf32>
    %cst_34 = arith.constant 2.000000e-01 : f32
    %98 = vector.broadcast %cst_34 : f32 to vector<16x24xf32>
    %99 = arith.mulf %98, %97 : vector<16x24xf32>
    %100 = arith.maximumf %97, %99 : vector<16x24xf32>
    %cst_35 = arith.constant -1.000000e+30 : f32
    %101 = vector.broadcast %cst_35 : f32 to vector<16x24xf32>
    %102 = arith.select %21, %100, %101 : vector<16x24xi1>, vector<16x24xf32>
    %cst_36 = arith.constant dense<0xFF800000> : vector<16xf32>
    %103 = vector.multi_reduction <maximumf>, %102, %cst_36 [1] : vector<16x24xf32> to vector<16xf32>
    %104 = vector.shape_cast %103 : vector<16xf32> to vector<16x1xf32>
    %105 = vector.broadcast %104 : vector<16x1xf32> to vector<16x24xf32>
    %106 = arith.subf %102, %105 : vector<16x24xf32>
    %107 = math.exp %106 : vector<16x24xf32>
    %cst_37 = arith.constant dense<0.000000e+00> : vector<16xf32>
    %108 = vector.multi_reduction <add>, %107, %cst_37 [1] : vector<16x24xf32> to vector<16xf32>
    %109 = vector.shape_cast %108 : vector<16xf32> to vector<16x1xf32>
    %110 = tpu.reciprocal %109 {approx = true} : vector<16x1xf32> -> vector<16x1xf32>
    %111 = vector.broadcast %110 : vector<16x1xf32> to vector<16x24xf32>
    %112 = arith.mulf %107, %111 : vector<16x24xf32>
    %113 = arith.truncf %112 : vector<16x24xf32> to vector<16x24xbf16>
    %114 = vector.extract_strided_slice %11 {offsets = [0, 96], sizes = [24, 32], strides = [1, 1]} : vector<24x128xbf16> to vector<24x32xbf16>
    %cst_38 = arith.constant dense<0.000000e+00> : vector<16x32xf32>
    %115 = tpu.matmul %113, %114, %cst_38 {dimension_numbers = #tpu.dot_dimension_numbers<[1], [0], [0], [1], [0, 0, 1, 1], [], []>} : vector<16x24xbf16>, vector<24x32xbf16>, vector<16x32xf32> -> vector<16x32xf32>
    %116 = tpu.concatenate %46, %69, %92, %115 in 1 : vector<16x32xf32>, vector<16x32xf32>, vector<16x32xf32>, vector<16x32xf32> -> vector<16x128xf32>
    %c0_39 = arith.constant 0 : index
    %c0_40 = arith.constant 0 : index
    %117 = vector.load %arg12[%c0_39, %c0_40] : memref<16x128xf32, #tpu.memory_space<vmem>>, vector<16x128xf32>
    %cst_41 = arith.constant 0.000000e+00 : f32
    %118 = vector.shape_cast %35 : vector<16x1xi1> to vector<16x1xi1>
    %119 = vector.broadcast %118 : vector<16x1xi1> to vector<16x128xi1>
    %120 = vector.broadcast %cst_41 : f32 to vector<16x128xf32>
    %121 = arith.select %119, %116, %120 : vector<16x128xi1>, vector<16x128xf32>
    %122 = arith.addf %117, %121 : vector<16x128xf32>
    %c0_42 = arith.constant 0 : index
    %c0_43 = arith.constant 0 : index
    %123 = vector.load %arg12[%c0_42, %c0_43] : memref<16x128xf32, #tpu.memory_space<vmem>>, vector<16x128xf32>
    tpu.vector_store %arg12[%c0_42, %c0_43], %122 {strides = array<i32>} : memref<16x128xf32, #tpu.memory_space<vmem>>, vector<16x128xf32>,
    %c1_i32 = arith.constant 1 : i32
    %124 = arith.cmpi eq, %arg1, %c1_i32 : i32
    %125 = arith.extui %124 : i1 to i32
    %c0_i32_44 = arith.constant 0 : i32
    %126 = arith.cmpi ne, %125, %c0_i32_44 : i32
    scf.if %126 {
      %c0_45 = arith.constant 0 : index
      %c0_46 = arith.constant 0 : index
      %127 = vector.load %arg12[%c0_45, %c0_46] : memref<16x128xf32, #tpu.memory_space<vmem>>, vector<16x128xf32>
      %c0_47 = arith.constant 0 : index
      %c0_48 = arith.constant 0 : index
      %128 = vector.load %arg9[%c0_47, %c0_48] : memref<1x128xf32, #tpu.memory_space<vmem>>, vector<1x128xf32>
      %129 = vector.broadcast %128 : vector<1x128xf32> to vector<16x128xf32>
      %130 = arith.mulf %127, %129 : vector<16x128xf32>
      %c0_49 = arith.constant 0 : index
      %c0_50 = arith.constant 0 : index
      %131 = vector.load %arg10[%c0_49, %c0_50] : memref<1x128xf32, #tpu.memory_space<vmem>>, vector<1x128xf32>
      %132 = vector.broadcast %131 : vector<1x128xf32> to vector<16x128xf32>
      %133 = arith.addf %130, %132 : vector<16x128xf32>
      %cst_51 = arith.constant 0.000000e+00 : f32
      %134 = vector.broadcast %cst_51 : f32 to vector<16x128xf32>
      %135 = arith.cmpf ogt, %133, %134 : vector<16x128xf32>
      %cst_52 = arith.constant 0.000000e+00 : f32
      %136 = vector.broadcast %cst_52 : f32 to vector<16x128xf32>
      %137 = arith.minimumf %133, %136 : vector<16x128xf32>
      %138 = math.exp %137 : vector<16x128xf32>
      %cst_53 = arith.constant 1.000000e+00 : f32
      %139 = vector.broadcast %cst_53 : f32 to vector<16x128xf32>
      %140 = arith.subf %138, %139 : vector<16x128xf32>
      %141 = arith.select %135, %133, %140 : vector<16x128xi1>, vector<16x128xf32>
      %142 = arith.truncf %141 : vector<16x128xf32> to vector<16x128xbf16>
      %c0_54 = arith.constant 0 : index
      %c0_55 = arith.constant 0 : index
      %143 = vector.load %arg11[%c0_54, %c0_55] : memref<16x128xbf16, #tpu.memory_space<vmem>>, vector<16x128xbf16>
      tpu.vector_store %arg11[%c0_54, %c0_55], %142 {strides = array<i32>} : memref<16x128xbf16, #tpu.memory_space<vmem>>, vector<16x128xbf16>,
    } else {
    }
    return
  }
  func.func @transform_0(%arg0: i32, %arg1: i32) -> (i32, i32) {
    %c0_i32 = arith.constant 0 : i32
    %c0_i32_0 = arith.constant 0 : i32
    %c0_i32_1 = arith.constant 0 : i32
    return %c0_i32, %c0_i32_0 : i32, i32
  }
  func.func @transform_1(%arg0: i32, %arg1: i32) -> (i32, i32, i32) {
    %c0_i32 = arith.constant 0 : i32
    %c0_i32_0 = arith.constant 0 : i32
    return %arg1, %arg0, %c0_i32 : i32, i32, i32
  }
  func.func @transform_2(%arg0: i32, %arg1: i32) -> (i32, i32, i32) {
    %c0_i32 = arith.constant 0 : i32
    %c0_i32_0 = arith.constant 0 : i32
    %c0_i32_1 = arith.constant 0 : i32
    return %arg1, %c0_i32, %c0_i32_0 : i32, i32, i32
  }
  func.func @transform_3(%arg0: i32, %arg1: i32) -> (i32, i32, i32) {
    %c0_i32 = arith.constant 0 : i32
    %c0_i32_0 = arith.constant 0 : i32
    %c0_i32_1 = arith.constant 0 : i32
    return %arg1, %c0_i32, %c0_i32_0 : i32, i32, i32
  }
  func.func @transform_4(%arg0: i32, %arg1: i32) -> (i32, i32, i32) {
    %c0_i32 = arith.constant 0 : i32
    %c0_i32_0 = arith.constant 0 : i32
    %c0_i32_1 = arith.constant 0 : i32
    return %arg1, %c0_i32, %c0_i32_0 : i32, i32, i32
  }
  func.func @transform_5(%arg0: i32, %arg1: i32) -> (i32, i32) {
    %c0_i32 = arith.constant 0 : i32
    %c0_i32_0 = arith.constant 0 : i32
    %c0_i32_1 = arith.constant 0 : i32
    return %c0_i32, %c0_i32_0 : i32, i32
  }
  func.func @transform_6(%arg0: i32, %arg1: i32) -> (i32, i32) {
    %c0_i32 = arith.constant 0 : i32
    %c0_i32_0 = arith.constant 0 : i32
    %c0_i32_1 = arith.constant 0 : i32
    return %c0_i32, %c0_i32_0 : i32, i32
  }
  func.func @transform_7(%arg0: i32, %arg1: i32) -> (i32, i32) {
    %c0_i32 = arith.constant 0 : i32
    %c0_i32_0 = arith.constant 0 : i32
    %c0_i32_1 = arith.constant 0 : i32
    return %c0_i32, %c0_i32_0 : i32, i32
  }
  func.func @transform_8(%arg0: i32, %arg1: i32) -> (i32, i32) {
    %c0_i32 = arith.constant 0 : i32
    %c0_i32_0 = arith.constant 0 : i32
    %c0_i32_1 = arith.constant 0 : i32
    return %c0_i32, %c0_i32_0 : i32, i32
  }
  func.func @transform_9(%arg0: i32, %arg1: i32) -> (i32, i32) {
    %c0_i32 = arith.constant 0 : i32
    %c0_i32_0 = arith.constant 0 : i32
    return %arg0, %c0_i32 : i32, i32
  }
}

</mosaic_0001>

<llo_original>
// kernel: tpu_custom_call.1
$region0: #{tpu_custom_call.1}
  #allocation0 [shape = 'u32[]', space=smem, size = 0x4, offset = 0x4, fixed_abs, tag = 'smem constant byte address 0x4 - core index']
  #allocation1 [shape = 'u32[144,128]{1,0:T(1,128)}', space=vmem, size = 0x12000, scoped, tag = 'internal scratch']
  #allocation2 [shape = 'f32[16,128]{1,0:T(8,128)}', space=vmem, size = 0x2000, scoped, tag = 'scratch operand']
  %s0 = inlined_call_operand.vmem [shape: bf16[24,16], index: 0, kind: input, shape index: {}]
  %s1 = inlined_call_operand.vmem [shape: bf16[2,16,24], index: 1, kind: input, shape index: {}]
  %s2 = inlined_call_operand.vmem [shape: bf16[2,16,128], index: 2, kind: input, shape index: {}]
  %s3 = inlined_call_operand.vmem [shape: bf16[2,4,16], index: 3, kind: input, shape index: {}]
  %s4 = inlined_call_operand.vmem [shape: bf16[2,16,4], index: 4, kind: input, shape index: {}]
  %s5 = inlined_call_operand.vmem [shape: bf16[16,128], index: 5, kind: input, shape index: {}]
  %s6 = inlined_call_operand.vmem [shape: f32[1,128], index: 6, kind: input, shape index: {}]
  %s7 = inlined_call_operand.vmem [shape: f32[1,128], index: 7, kind: input, shape index: {}]
  %s8 = inlined_call_operand.vmem [shape: f32[1,128], index: 8, kind: input, shape index: {}]
  %s9 = inlined_call_operand.hbm [shape: bf16[16,128], index: 9, kind: output, shape index: {}]
  %s10 = sld [smem:[#allocation0]]
  $region77: #{tpu_custom_call.1} parent=0
    _
  %s12 = ssub.s32 1, %s10
  %s13 = scalar_select 0, %s12, %s10
  $region1: #{tpu_custom_call.1} parent=0
    #allocation3 [shape = 'u8[4096]{0}', space=vmem, size = 0x1000, scoped, tag = 'output window, operand 0, single buffered']
    #allocation4 [shape = 's32[2]{0}', space=sflag, size = 0x8, scoped, tag = 'scoped memory for tpu_custom_call.1']
    %14 = vsyncpa [#allocation4], 0
    loop: start=0, step=1, limit=4
    $region2: #{tpu_custom_call.1} parent=1 // loop_pre_header
      _
    $region3: #{tpu_custom_call.1} parent=1 // loop_header
      %s16 = sphi 0, %s20
      %p17 = scmp.ge.s32.totalorder %s16, 4
      %s23 = sphi 0, %s35
      %s24 = sphi 0, %s31
      %s25 = sphi 0, %s23
      %s26 = sphi 0, %s24
      %s27 = sphi 0, %s25
      %s28 = sphi 0, %s26
      %s36 = sphi 0, %s36
      %s38 = sphi 0, %s36
      %s39 = sphi 0, %s38
      %s53 = sphi 0, %s39
      %s61 = sphi 0, %s63
      %s64 = sphi 0, %s61
      %s65 = sphi 0, %s64
      %s81 = sphi 0, %s65
      %s87 = sphi 0, %s89
      %s90 = sphi 0, %s87
      %s91 = sphi 0, %s90
      %s107 = sphi 0, %s91
      %s113 = sphi 0, %s115
      %s116 = sphi 0, %s113
      %s117 = sphi 0, %s116
      %s133 = sphi 0, %s117
      %s139 = sphi 0, %s141
      %s142 = sphi 0, %s139
      %s143 = sphi 0, %s142
      %s159 = sphi 0, %s143
      %s163 = sphi 0, %s163
      %s165 = sphi 0, %s163
      %s166 = sphi 0, %s165
      %s180 = sphi 0, %s166
      %s184 = sphi 0, %s184
      %s186 = sphi 0, %s184
      %s187 = sphi 0, %s186
      %s201 = sphi 0, %s187
      %s205 = sphi 0, %s205
      %s207 = sphi 0, %s205
      %s208 = sphi 0, %s207
      %s222 = sphi 0, %s208
      %s226 = sphi 0, %s226
      %s228 = sphi 0, %s226
      %s229 = sphi 0, %s228
      %s243 = sphi 0, %s229
      %s249 = sphi 0, %s251
      %s252 = sphi 0, %s249
      %s253 = sphi 0, %s252
      %s269 = sphi 0, %s253
    $region4: #{tpu_custom_call.1} parent=1 // loop_header_branch
      %19 = sbr.rel (%p17) target = $region8
    $region5: #{tpu_custom_call.1} parent=1 // loop_body
      %s21 = ssub.s32 %s16, 1
      %s22 = ssub.s32 %s16, 2
      %s29 = sadd.s32 1, %s24
      %p30 = scmp.ge.s32.totalorder %s29, 2
      %s31 = scalar_select %p30, 0, %s29
      %s32 = sadd.s32 1, %s23
      %s33 = scalar_select %p30, %s32, %s23
      %p34 = scmp.ge.s32.totalorder %s33, 1
      %s35 = scalar_select %p34, 0, %s33
      %s37 = sadd.s32 %s36, 1
      %p40 = scmp.eq.s32.totalorder %s16, 1
      %p41 = scmp.ne.s32.totalorder %s36, %s38
      %p42 = scmp.eq.s32.totalorder %s16, 0
      %p43 = por %p41, %p42
      %p44 = scmp.ne.s32.totalorder %s36, %s38
      %p45 = scmp.eq.s32.totalorder %s21, 1
      %p46 = por %p44, %p45
      %p47 = scmp.ne.s32.totalorder %s38, %s39
      %p48 = scmp.eq.s32.totalorder %s21, 0
      %p49 = por %p47, %p48
      %p50 = scmp.ne.s32.totalorder %s38, %s39
      %p51 = scmp.eq.s32.totalorder %s22, 1
      %p52 = por %p50, %p51
      %p54 = scmp.ne.s32.totalorder %s39, %s53
      %p55 = scmp.eq.s32.totalorder %s22, 0
      %p56 = por %p54, %p55
      %s57 = ssub.s32 %s24, %s31
      %s58 = ssub.s32 %s23, %s35
      %s59 = sor.u32 %s57, %s58
      %p60 = scmp.eq.s32.totalorder %s59, 0
      %s62 = sadd.s32 %s61, 1
      %s63 = scalar_select %p60, %s61, %s62
      %p66 = pneg %p60
      %p67 = scmp.eq.s32.totalorder %s16, 1
      %p68 = por %p66, %p67
      %p69 = scmp.ne.s32.totalorder %s61, %s64
      %p70 = scmp.eq.s32.totalorder %s16, 0
      %p71 = por %p69, %p70
      %p72 = scmp.ne.s32.totalorder %s61, %s64
      %p73 = scmp.eq.s32.totalorder %s21, 1
      %p74 = por %p72, %p73
      %p75 = scmp.ne.s32.totalorder %s64, %s65
      %p76 = scmp.eq.s32.totalorder %s21, 0
      %p77 = por %p75, %p76
      %p78 = scmp.ne.s32.totalorder %s64, %s65
      %p79 = scmp.eq.s32.totalorder %s22, 1
      %p80 = por %p78, %p79
      %p82 = scmp.ne.s32.totalorder %s65, %s81
      %p83 = scmp.eq.s32.totalorder %s22, 0
      %p84 = por %p82, %p83
      %s85 = ssub.s32 %s24, %s31
      %p86 = scmp.eq.s32.totalorder %s85, 0
      %s88 = sadd.s32 %s87, 1
      %s89 = scalar_select %p86, %s87, %s88
      %p92 = pneg %p86
      %p93 = scmp.eq.s32.totalorder %s16, 1
      %p94 = por %p92, %p93
      %p95 = scmp.ne.s32.totalorder %s87, %s90
      %p96 = scmp.eq.s32.totalorder %s16, 0
      %p97 = por %p95, %p96
      %p98 = scmp.ne.s32.totalorder %s87, %s90
      %p99 = scmp.eq.s32.totalorder %s21, 1
      %p100 = por %p98, %p99
      %p101 = scmp.ne.s32.totalorder %s90, %s91
      %p102 = scmp.eq.s32.totalorder %s21, 0
      %p103 = por %p101, %p102
      %p104 = scmp.ne.s32.totalorder %s90, %s91
      %p105 = scmp.eq.s32.totalorder %s22, 1
      %p106 = por %p104, %p105
      %p108 = scmp.ne.s32.totalorder %s91, %s107
      %p109 = scmp.eq.s32.totalorder %s22, 0
      %p110 = por %p108, %p109
      %s111 = ssub.s32 %s24, %s31
      %p112 = scmp.eq.s32.totalorder %s111, 0
      %s114 = sadd.s32 %s113, 1
      %s115 = scalar_select %p112, %s113, %s114
      %p118 = pneg %p112
      %p119 = scmp.eq.s32.totalorder %s16, 1
      %p120 = por %p118, %p119
      %p121 = scmp.ne.s32.totalorder %s113, %s116
      %p122 = scmp.eq.s32.totalorder %s16, 0
      %p123 = por %p121, %p122
      %p124 = scmp.ne.s32.totalorder %s113, %s116
      %p125 = scmp.eq.s32.totalorder %s21, 1
      %p126 = por %p124, %p125
      %p127 = scmp.ne.s32.totalorder %s116, %s117
      %p128 = scmp.eq.s32.totalorder %s21, 0
      %p129 = por %p127, %p128
      %p130 = scmp.ne.s32.totalorder %s116, %s117
      %p131 = scmp.eq.s32.totalorder %s22, 1
      %p132 = por %p130, %p131
      %p134 = scmp.ne.s32.totalorder %s117, %s133
      %p135 = scmp.eq.s32.totalorder %s22, 0
      %p136 = por %p134, %p135
      %s137 = ssub.s32 %s24, %s31
      %p138 = scmp.eq.s32.totalorder %s137, 0
      %s140 = sadd.s32 %s139, 1
      %s141 = scalar_select %p138, %s139, %s140
      %p144 = pneg %p138
      %p145 = scmp.eq.s32.totalorder %s16, 1
      %p146 = por %p144, %p145
      %p147 = scmp.ne.s32.totalorder %s139, %s142
      %p148 = scmp.eq.s32.totalorder %s16, 0
      %p149 = por %p147, %p148
      %p150 = scmp.ne.s32.totalorder %s139, %s142
      %p151 = scmp.eq.s32.totalorder %s21, 1
      %p152 = por %p150, %p151
      %p153 = scmp.ne.s32.totalorder %s142, %s143
      %p154 = scmp.eq.s32.totalorder %s21, 0
      %p155 = por %p153, %p154
      %p156 = scmp.ne.s32.totalorder %s142, %s143
      %p157 = scmp.eq.s32.totalorder %s22, 1
      %p158 = por %p156, %p157
      %p160 = scmp.ne.s32.totalorder %s143, %s159
      %p161 = scmp.eq.s32.totalorder %s22, 0
      %p162 = por %p160, %p161
      %s164 = sadd.s32 %s163, 1
      %p167 = scmp.eq.s32.totalorder %s16, 1
      %p168 = scmp.ne.s32.totalorder %s163, %s165
      %p169 = scmp.eq.s32.totalorder %s16, 0
      %p170 = por %p168, %p169
      %p171 = scmp.ne.s32.totalorder %s163, %s165
      %p172 = scmp.eq.s32.totalorder %s21, 1
      %p173 = por %p171, %p172
      %p174 = scmp.ne.s32.totalorder %s165, %s166
      %p175 = scmp.eq.s32.totalorder %s21, 0
      %p176 = por %p174, %p175
      %p177 = scmp.ne.s32.totalorder %s165, %s166
      %p178 = scmp.eq.s32.totalorder %s22, 1
      %p179 = por %p177, %p178
      %p181 = scmp.ne.s32.totalorder %s166, %s180
      %p182 = scmp.eq.s32.totalorder %s22, 0
      %p183 = por %p181, %p182
      %s185 = sadd.s32 %s184, 1
      %p188 = scmp.eq.s32.totalorder %s16, 1
      %p189 = scmp.ne.s32.totalorder %s184, %s186
      %p190 = scmp.eq.s32.totalorder %s16, 0
      %p191 = por %p189, %p190
      %p192 = scmp.ne.s32.totalorder %s184, %s186
      %p193 = scmp.eq.s32.totalorder %s21, 1
      %p194 = por %p192, %p193
      %p195 = scmp.ne.s32.totalorder %s186, %s187
      %p196 = scmp.eq.s32.totalorder %s21, 0
      %p197 = por %p195, %p196
      %p198 = scmp.ne.s32.totalorder %s186, %s187
      %p199 = scmp.eq.s32.totalorder %s22, 1
      %p200 = por %p198, %p199
      %p202 = scmp.ne.s32.totalorder %s187, %s201
      %p203 = scmp.eq.s32.totalorder %s22, 0
      %p204 = por %p202, %p203
      %s206 = sadd.s32 %s205, 1
      %p209 = scmp.eq.s32.totalorder %s16, 1
      %p210 = scmp.ne.s32.totalorder %s205, %s207
      %p211 = scmp.eq.s32.totalorder %s16, 0
      %p212 = por %p210, %p211
      %p213 = scmp.ne.s32.totalorder %s205, %s207
      %p214 = scmp.eq.s32.totalorder %s21, 1
      %p215 = por %p213, %p214
      %p216 = scmp.ne.s32.totalorder %s207, %s208
      %p217 = scmp.eq.s32.totalorder %s21, 0
      %p218 = por %p216, %p217
      %p219 = scmp.ne.s32.totalorder %s207, %s208
      %p220 = scmp.eq.s32.totalorder %s22, 1
      %p221 = por %p219, %p220
      %p223 = scmp.ne.s32.totalorder %s208, %s222
      %p224 = scmp.eq.s32.totalorder %s22, 0
      %p225 = por %p223, %p224
      %s227 = sadd.s32 %s226, 1
      %p230 = scmp.eq.s32.totalorder %s16, 1
      %p231 = scmp.ne.s32.totalorder %s226, %s228
      %p232 = scmp.eq.s32.totalorder %s16, 0
      %p233 = por %p231, %p232
      %p234 = scmp.ne.s32.totalorder %s226, %s228
      %p235 = scmp.eq.s32.totalorder %s21, 1
      %p236 = por %p234, %p235
      %p237 = scmp.ne.s32.totalorder %s228, %s229
      %p238 = scmp.eq.s32.totalorder %s21, 0
      %p239 = por %p237, %p238
      %p240 = scmp.ne.s32.totalorder %s228, %s229
      %p241 = scmp.eq.s32.totalorder %s22, 1
      %p242 = por %p240, %p241
      %p244 = scmp.ne.s32.totalorder %s229, %s243
      %p245 = scmp.eq.s32.totalorder %s22, 0
      %p246 = por %p244, %p245
      %s247 = ssub.s32 %s23, %s35
      %p248 = scmp.eq.s32.totalorder %s247, 0
      %s250 = sadd.s32 %s249, 1
      %s251 = scalar_select %p248, %s249, %s250
      %p254 = pneg %p248
      %p255 = scmp.eq.s32.totalorder %s16, 1
      %p256 = por %p254, %p255
      %p257 = scmp.ne.s32.totalorder %s249, %s252
      %p258 = scmp.eq.s32.totalorder %s16, 0
      %p259 = por %p257, %p258
      %p260 = scmp.ne.s32.totalorder %s249, %s252
      %p261 = scmp.eq.s32.totalorder %s21, 1
      %p262 = por %p260, %p261
      %p263 = scmp.ne.s32.totalorder %s252, %s253
      %p264 = scmp.eq.s32.totalorder %s21, 0
      %p265 = por %p263, %p264
      %p266 = scmp.ne.s32.totalorder %s252, %s253
      %p267 = scmp.eq.s32.totalorder %s22, 1
      %p268 = por %p266, %p267
      %p270 = scmp.ne.s32.totalorder %s253, %s269
      %p271 = scmp.eq.s32.totalorder %s22, 0
      %p272 = por %p270, %p271
      %p273 = scmp.le.s32.totalorder 1, %s16
      %p274 = scmp.lt.s32.totalorder %s16, 3
      %p275 = pnand %p273, %p274
      %p276 = pneg %p275
      // Predicated region
      $region9: #{tpu_custom_call.1} parent=5 // pred_check
        _
      $region10: #{tpu_custom_call.1} parent=5 // pred_check_branch
        %278 = sbr.rel (%p275) target = $region12
      $region11: #{tpu_custom_call.1} parent=5 // pred_region
        %s279 = ssub.s32 %s16, 1
        // Predicated region
        $region13: #{tpu_custom_call.1} parent=11 // pred_check
          %p280 = pneg %p49
        $region14: #{tpu_custom_call.1} parent=11 // pred_check_branch
          %282 = sbr.rel (%p280) target = $region16
        $region15: #{tpu_custom_call.1} parent=11 // pred_region
          _
        $region16: #{tpu_custom_call.1} parent=11 // pred_fallthru
          _
        // Predicated region
        $region17: #{tpu_custom_call.1} parent=11 // pred_check
          %p283 = pneg %p176
        $region18: #{tpu_custom_call.1} parent=11 // pred_check_branch
          %285 = sbr.rel (%p283) target = $region20
        $region19: #{tpu_custom_call.1} parent=11 // pred_region
          _
        $region20: #{tpu_custom_call.1} parent=11 // pred_fallthru
          _
        // Predicated region
        $region21: #{tpu_custom_call.1} parent=11 // pred_check
          %p286 = pneg %p197
        $region22: #{tpu_custom_call.1} parent=11 // pred_check_branch
          %288 = sbr.rel (%p286) target = $region24
        $region23: #{tpu_custom_call.1} parent=11 // pred_region
          _
        $region24: #{tpu_custom_call.1} parent=11 // pred_fallthru
          _
        // Predicated region
        $region25: #{tpu_custom_call.1} parent=11 // pred_check
          %p289 = pneg %p218
        $region26: #{tpu_custom_call.1} parent=11 // pred_check_branch
          %291 = sbr.rel (%p289) target = $region28
        $region27: #{tpu_custom_call.1} parent=11 // pred_region
          _
        $region28: #{tpu_custom_call.1} parent=11 // pred_fallthru
          _
        // Predicated region
        $region29: #{tpu_custom_call.1} parent=11 // pred_check
          %p292 = pneg %p239
        $region30: #{tpu_custom_call.1} parent=11 // pred_check_branch
          %294 = sbr.rel (%p292) target = $region32
        $region31: #{tpu_custom_call.1} parent=11 // pred_region
          _
        $region32: #{tpu_custom_call.1} parent=11 // pred_fallthru
          _
      $region12: #{tpu_custom_call.1} parent=5 // pred_fallthru
        _
      %p295 = scmp.lt.s32.totalorder %s16, 2
      // Predicated region
      $region33: #{tpu_custom_call.1} parent=5 // pred_check
        %p296 = pneg %p295
      $region34: #{tpu_custom_call.1} parent=5 // pred_check_branch
        %298 = sbr.rel (%p296) target = $region36
      $region35: #{tpu_custom_call.1} parent=5 // pred_region
        // Predicated region
        $region37: #{tpu_custom_call.1} parent=35 // pred_check
          %p299 = pneg %p71
        $region38: #{tpu_custom_call.1} parent=35 // pred_check_branch
          %301 = sbr.rel (%p299) target = $region40
        $region39: #{tpu_custom_call.1} parent=35 // pred_region
          %s302 = smul.u32 2, %s23
          %p303 = scmp.lt.s32.totalorder %s24, 1
          %s304 = scalar_select %p303, %s24, 1
          %p305 = scmp.lt.s32.totalorder %s302, 1
          %s306 = scalar_select %p305, %s302, 1
          %s307 = smul.addr %s304, 2
          %s308 = sadd.s32 %s306, %s307
          %s309 = smul.addr %s308, 4
          %s310 = scalar_lea.vmem %s1, %s309
          %s311 = smul.u32 2, %s23
        $region40: #{tpu_custom_call.1} parent=35 // pred_fallthru
          _
        // Predicated region
        $region41: #{tpu_custom_call.1} parent=35 // pred_check
          %p312 = pneg %p97
        $region42: #{tpu_custom_call.1} parent=35 // pred_check_branch
          %314 = sbr.rel (%p312) target = $region44
        $region43: #{tpu_custom_call.1} parent=35 // pred_region
          %p315 = scmp.lt.s32.totalorder %s24, 1
          %s316 = scalar_select %p315, %s24, 1
          %s317 = smul.addr %s316, 2
          %s318 = smul.addr %s317, 4
          %s319 = scalar_lea.vmem %s2, %s318
        $region44: #{tpu_custom_call.1} parent=35 // pred_fallthru
          _
        // Predicated region
        $region45: #{tpu_custom_call.1} parent=35 // pred_check
          %p320 = pneg %p123
        $region46: #{tpu_custom_call.1} parent=35 // pred_check_branch
          %322 = sbr.rel (%p320) target = $region48
        $region47: #{tpu_custom_call.1} parent=35 // pred_region
          %p323 = scmp.lt.s32.totalorder %s24, 1
          %s324 = scalar_select %p323, %s24, 1
          %s325 = smul.addr %s324, 2
          %s326 = scalar_lea.vmem %s3, %s325
        $region48: #{tpu_custom_call.1} parent=35 // pred_fallthru
          _
        // Predicated region
        $region49: #{tpu_custom_call.1} parent=35 // pred_check
          %p327 = pneg %p149
        $region50: #{tpu_custom_call.1} parent=35 // pred_check_branch
          %329 = sbr.rel (%p327) target = $region52
        $region51: #{tpu_custom_call.1} parent=35 // pred_region
          %p330 = scmp.lt.s32.totalorder %s24, 1
          %s331 = scalar_select %p330, %s24, 1
          %s332 = smul.addr %s331, 2
          %s333 = smul.addr %s332, 4
          %s334 = scalar_lea.vmem %s4, %s333
        $region52: #{tpu_custom_call.1} parent=35 // pred_fallthru
          _
      $region36: #{tpu_custom_call.1} parent=5 // pred_fallthru
        _
      %p335 = scmp.le.s32.totalorder 1, %s16
      %p336 = scmp.lt.s32.totalorder %s16, 3
      %p337 = pnand %p335, %p336
      %p338 = pneg %p337
      // Predicated region
      $region53: #{tpu_custom_call.1} parent=5 // pred_check
        _
      $region54: #{tpu_custom_call.1} parent=5 // pred_check_branch
        %340 = sbr.rel (%p337) target = $region56
      $region55: #{tpu_custom_call.1} parent=5 // pred_region
        %s341 = ssub.s32 %s16, 1
        %p342 = pneg %p49
        %p343 = pneg %p46
        %s344 = smul.u32 2, %s25
        %p345 = scmp.lt.s32.totalorder %s26, 1
        %s346 = scalar_select %p345, %s26, 1
        %p347 = scmp.lt.s32.totalorder %s344, 1
        %s348 = scalar_select %p347, %s344, 1
        %s349 = smul.addr %s346, 2
        %s350 = sadd.s32 %s348, %s349
        %s351 = smul.addr %s350, 4
        %s352 = scalar_lea.vmem %s1, %s351
        %p353 = pneg %p77
        %p354 = pneg %p74
        %p355 = scmp.lt.s32.totalorder %s26, 1
        %s356 = scalar_select %p355, %s26, 1
        %s357 = smul.addr %s356, 2
        %s358 = smul.addr %s357, 4
        %s359 = scalar_lea.vmem %s2, %s358
        %p360 = pneg %p103
        %p361 = pneg %p100
        %p362 = scmp.lt.s32.totalorder %s26, 1
        %s363 = scalar_select %p362, %s26, 1
        %s364 = smul.addr %s363, 2
        %s365 = scalar_lea.vmem %s3, %s364
        %p366 = pneg %p129
        %p367 = pneg %p126
        %p368 = scmp.lt.s32.totalorder %s26, 1
        %s369 = scalar_select %p368, %s26, 1
        %s370 = smul.addr %s369, 2
        %s371 = smul.addr %s370, 4
        %s372 = scalar_lea.vmem %s4, %s371
        %p373 = pneg %p155
        %p374 = pneg %p152
        %p375 = pneg %p176
        %p376 = pneg %p173
        %p377 = pneg %p197
        %p378 = pneg %p194
        %p379 = pneg %p218
        %p380 = pneg %p215
        %p381 = pneg %p239
        %p382 = pneg %p236
        %p383 = pneg %p265
        %p384 = pneg %p262
        %s385 = smul.u32 2, %s25
        %p386 = scmp.lt.s32.totalorder %s26, 1
        %s387 = scalar_select %p386, %s26, 1
        %p388 = scmp.lt.s32.totalorder %s385, 1
        %s389 = scalar_select %p388, %s385, 1
        %s390 = smul.addr %s387, 2
        %s391 = sadd.s32 %s389, %s390
        %s392 = smul.addr %s391, 4
        %s393 = scalar_lea.vmem %s1, %s392
        %s394 = smul.u32 2, %s25
        %p395 = scmp.lt.s32.totalorder %s26, 1
        %s396 = scalar_select %p395, %s26, 1
        %s397 = smul.addr %s396, 2
        %s398 = smul.addr %s397, 4
        %s399 = scalar_lea.vmem %s2, %s398
        %p400 = scmp.lt.s32.totalorder %s26, 1
        %s401 = scalar_select %p400, %s26, 1
        %s402 = smul.addr %s401, 2
        %s403 = scalar_lea.vmem %s3, %s402
        %p404 = scmp.lt.s32.totalorder %s26, 1
        %s405 = scalar_select %p404, %s26, 1
        %s406 = smul.addr %s405, 2
        %s407 = smul.addr %s406, 4
        %s408 = scalar_lea.vmem %s4, %s407
        %s409 = smul.u32 2, %s25
        %s413 = smul.u32 %s25, 16
        %v414 = vld [vmem:[%s0] sm:$0xf]
        %v415 = vld [vmem:[%s0 + $0x4] sm:$0xf]
        %v416 = vld [vmem:[%s0 + $0x8] sm:$0xf]
        %s417 = sshra.s32 %s413, 3
        %s418 = sand.u32 %s413, 7
        %s419 = smul.addr %s417, 4
        %s420 = scalar_lea.vmem %s0, %s419
        %v421 = vld [vmem:[%s420] sm:$0xf]
        %v422 = vld [vmem:[%s420 + $0x4] sm:$0xf]
        %p423 = scmp.eq.s32.totalorder %s26, 0
        // Predicated region
        $region57: #{tpu_custom_call.1} parent=55 // pred_check
          %p424 = pneg %p423
        $region58: #{tpu_custom_call.1} parent=55 // pred_check_branch
          %426 = sbr.rel (%p424) target = $region60
        $region59: #{tpu_custom_call.1} parent=55 // pred_region
          %v427 = vld [vmem:[%s5] sm:$0xf]
          %v428 = vld [vmem:[%s5 + $0x4] sm:$0xf]
          %v429 = vld [vmem:[%s6] sm:$0x1]
          %v431 = vlaneseq
          %v432 = vshrl.u32 %v431, 7
          %v433 = vsub.s32 0, %v432
          %v434 = vrot.slane %v429, %v433
          %v438 = vunpack.c.l.b16 %v421
          %v439 = vunpack.c.l.b16 %v422
          %v440 = vpack.c.b16 %v439, %v438
          %v443 = vunpack.c.l.b16 %v427
          %v444 = vunpack.c.l.b16 %v428
          %v445 = vpack.c.b16 %v444, %v443
          %vm447 = vcmask 130048
          %v449 = vsel %vm447, %v440, 0
          %451 = vmatprep.subr.bf16.mxu0 0
          %452 = vmatpush1.bf16.msra.mxu0 %v445
          %453 = vmatprep.subr.bf16.mxu0 0
          %454 = vmatpush1.bf16.msra.mxu0 0
          %455 = vmatprep.subr.bf16.mxu0 0
          %456 = vmatpush1.bf16.msra.mxu0 0
          %457 = vmatprep.subr.bf16.mxu0 0
          %458 = vmatpush1.bf16.msra.mxu0 0
          %459 = vmatprep.subr.bf16.mxu0 0
          %460 = vmatpush1.bf16.msra.mxu0 0
          %461 = vmatprep.subr.bf16.mxu0 0
          %462 = vmatpush1.bf16.msra.mxu0 0
          %463 = vmatprep.subr.bf16.mxu0 0
          %464 = vmatpush1.bf16.msra.mxu0 0
          %465 = vmatprep.subr.bf16.mxu0 0
          %466 = vmatpush1.bf16.msra.mxu0 0
          %467 = vmatprep.subr.bf16.mxu0 0
          %468 = vmatpush1.bf16.msra.mxu0 0
          %469 = vmatprep.subr.bf16.mxu0 0
          %470 = vmatpush1.bf16.msra.mxu0 0
          %471 = vmatprep.subr.bf16.mxu0 0
          %472 = vmatpush1.bf16.msra.mxu0 0
          %473 = vmatprep.subr.bf16.mxu0 0
          %474 = vmatpush1.bf16.msra.mxu0 0
          %475 = vmatprep.subr.bf16.mxu0 0
          %476 = vmatpush1.bf16.msra.mxu0 0
          %477 = vmatprep.subr.bf16.mxu0 0
          %478 = vmatpush1.bf16.msra.mxu0 0
          %479 = vmatprep.subr.bf16.mxu0 0
          %480 = vmatpush1.bf16.msra.mxu0 0
          %481 = vmatprep.subr.bf16.mxu0 0
          %482 = vmatpush1.bf16.msra.mxu0 0
          %483 = vmatprep.mubr.bf16.mxu0 0
          %484 = vmatmul.mubr.bf16.gmra.mrb[0].mxu0 %v449
          %v485 = vpop.f32.mrb[0].mxu0
          %v486 = vadd.f32 %v434, %v485
          %v487 = vpop.f32.mrb[0].mxu0
          %v488 = vpop.f32.mrb[0].mxu0
          %v489 = vadd.f32 %v434, %v488
          %v490 = vpop.f32.mrb[0].mxu0
          %491 = vdwg.mxu0
          %492 = vst [vmem:[#allocation2] sm:$0xff] %v486
          %493 = vst [vmem:[#allocation2 + $0x8] sm:$0xff] %v489
        $region60: #{tpu_custom_call.1} parent=55 // pred_fallthru
          _
        %v494 = vld [vmem:[%s399] sm:$0xf]
        %v495 = vld [vmem:[%s399 + $0x4] sm:$0xf]
        %v499 = vunpack.c.l.b16 %v414
        %v500 = vunpack.c.l.b16 %v415
        %v501 = vunpack.c.l.b16 %v416
        %v502 = vpack.c.b16 %v500, %v499
        %v503 = vpack.c.b16 %v501, %v501
        %v506 = vunpack.c.l.b16 %v494
        %v507 = vunpack.c.l.b16 %v495
        %v508 = vpack.c.b16 %v507, %v506
        %vm510 = vcmask 130048
        %v512 = vsel %vm510, %v502, 0
        %v515 = vsel %vm510, %v503, 0
        %517 = vmatprep.subr.bf16.mxu0 0
        %518 = vmatpush1.bf16.msra.mxu0 %v508
        %519 = vmatprep.subr.bf16.mxu0 0
        %520 = vmatpush1.bf16.msra.mxu0 0
        %521 = vmatprep.subr.bf16.mxu0 0
        %522 = vmatpush1.bf16.msra.mxu0 0
        %523 = vmatprep.subr.bf16.mxu0 0
        %524 = vmatpush1.bf16.msra.mxu0 0
        %525 = vmatprep.subr.bf16.mxu0 0
        %526 = vmatpush1.bf16.msra.mxu0 0
        %527 = vmatprep.subr.bf16.mxu0 0
        %528 = vmatpush1.bf16.msra.mxu0 0
        %529 = vmatprep.subr.bf16.mxu0 0
        %530 = vmatpush1.bf16.msra.mxu0 0
        %531 = vmatprep.subr.bf16.mxu0 0
        %532 = vmatpush1.bf16.msra.mxu0 0
        %533 = vmatprep.subr.bf16.mxu0 0
        %534 = vmatpush1.bf16.msra.mxu0 0
        %535 = vmatprep.subr.bf16.mxu0 0
        %536 = vmatpush1.bf16.msra.mxu0 0
        %537 = vmatprep.subr.bf16.mxu0 0
        %538 = vmatpush1.bf16.msra.mxu0 0
        %539 = vmatprep.subr.bf16.mxu0 0
        %540 = vmatpush1.bf16.msra.mxu0 0
        %541 = vmatprep.subr.bf16.mxu0 0
        %542 = vmatpush1.bf16.msra.mxu0 0
        %543 = vmatprep.subr.bf16.mxu0 0
        %544 = vmatpush1.bf16.msra.mxu0 0
        %545 = vmatprep.subr.bf16.mxu0 0
        %546 = vmatpush1.bf16.msra.mxu0 0
        %547 = vmatprep.subr.bf16.mxu0 0
        %548 = vmatpush1.bf16.msra.mxu0 0
        %549 = vmatprep.mubr.bf16.mxu0 0
        %550 = vmatmul.mubr.bf16.gmra.mrb[0].mxu0 %v512
        %v551 = vpop.f32.mrb[0].mxu0
        %v552 = vadd.f32 0.0, %v551
        %v553 = vpop.f32.mrb[0].mxu0
        %v554 = vpop.f32.mrb[0].mxu0
        %v555 = vadd.f32 0.0, %v554
        %v556 = vpop.f32.mrb[0].mxu0
        %557 = vmatprep.mubr.bf16.mxu0 0
        %558 = vmatmul.mubr.bf16.gmra.mrb[0].mxu0 %v515
        %v559 = vpop.f32.mrb[0].mxu0
        %v560 = vadd.f32 0.0, %v559
        %v561 = vpop.f32.mrb[0].mxu0
        %v562 = vpop.f32.mrb[0].mxu0
        %v563 = vpop.f32.mrb[0].mxu0
        %564 = vdwg.mxu0
        %v565 = vpack.c.bf16 %v555, %v552
        %v566 = vpack.c.bf16 %v560, %v560
        %v567 = vld [vmem:[%s403] sm:$0x3]
        %v569 = vsel %vm510, %v567, 0
        %571 = vmatprep.subr.bf16.mxu0 0
        %572 = vmatpush1.bf16.xpose.msra.mxu0 %v512
        %573 = vmatprep.subr.bf16.mxu0 0
        %574 = vmatpush1.bf16.xpose.msra.mxu0 %v515
        %575 = vmatprep.subr.bf16.mxu0 0
        %576 = vmatpush1.bf16.xpose.msra.mxu0 0
        %577 = vmatprep.subr.bf16.mxu0 0
        %578 = vmatpush1.bf16.xpose.msra.mxu0 0
        %579 = vmatprep.subr.bf16.mxu0 0
        %580 = vmatpush1.bf16.xpose.msra.mxu0 0
        %581 = vmatprep.subr.bf16.mxu0 0
        %582 = vmatpush1.bf16.xpose.msra.mxu0 0
        %583 = vmatprep.subr.bf16.mxu0 0
        %584 = vmatpush1.bf16.xpose.msra.mxu0 0
        %585 = vmatprep.subr.bf16.mxu0 0
        %586 = vmatpush1.bf16.xpose.msra.mxu0 0
        %587 = vmatprep.subr.bf16.mxu0 0
        %588 = vmatpush1.bf16.xpose.msra.mxu0 0
        %589 = vmatprep.subr.bf16.mxu0 0
        %590 = vmatpush1.bf16.xpose.msra.mxu0 0
        %591 = vmatprep.subr.bf16.mxu0 0
        %592 = vmatpush1.bf16.xpose.msra.mxu0 0
        %593 = vmatprep.subr.bf16.mxu0 0
        %594 = vmatpush1.bf16.xpose.msra.mxu0 0
        %595 = vmatprep.subr.bf16.mxu0 0
        %596 = vmatpush1.bf16.xpose.msra.mxu0 0
        %597 = vmatprep.subr.bf16.mxu0 0
        %598 = vmatpush1.bf16.xpose.msra.mxu0 0
        %599 = vmatprep.subr.bf16.mxu0 0
        %600 = vmatpush1.bf16.xpose.msra.mxu0 0
        %601 = vmatprep.subr.bf16.mxu0 0
        %602 = vmatpush1.bf16.xpose.msra.mxu0 0
        %603 = vmatprep.mubr.bf16.mxu0 0
        %604 = vmatmul.mubr.bf16.gmra.mrb[0].mxu0 %v569
        %v605 = vpop.f32.mrb[0].mxu0
        %v606 = vadd.f32 0.0, %v605
        %v607 = vpop.f32.mrb[0].mxu0
        %v608 = vpop.f32.mrb[0].mxu0
        %v609 = vpop.f32.mrb[0].mxu0
        %610 = vdwg.mxu0
        %v611 = vld [vmem:[%s408] sm:$0xf]
        %v612 = vld [vmem:[%s408 + $0x4] sm:$0xf]
        %v615 = vunpack.c.l.b16 %v421
        %v616 = vunpack.c.l.b16 %v422
        %v617 = vpack.c.b16 %v616, %v615
        %v620 = vunpack.c.l.b16 %v611
        %v621 = vunpack.c.l.b16 %v612
        %v622 = vpack.c.b16 %v621, %v620
        %v625 = vsel %vm510, %v617, 0
        %627 = vmatprep.subr.bf16.mxu0 0
        %628 = vmatpush1.bf16.msra.mxu0 %v622
        %629 = vmatprep.subr.bf16.mxu0 0
        %630 = vmatpush1.bf16.msra.mxu0 0
        %631 = vmatprep.subr.bf16.mxu0 0
        %632 = vmatpush1.bf16.msra.mxu0 0
        %633 = vmatprep.subr.bf16.mxu0 0
        %634 = vmatpush1.bf16.msra.mxu0 0
        %635 = vmatprep.subr.bf16.mxu0 0
        %636 = vmatpush1.bf16.msra.mxu0 0
        %637 = vmatprep.subr.bf16.mxu0 0
        %638 = vmatpush1.bf16.msra.mxu0 0
        %639 = vmatprep.subr.bf16.mxu0 0
        %640 = vmatpush1.bf16.msra.mxu0 0
        %641 = vmatprep.subr.bf16.mxu0 0
        %642 = vmatpush1.bf16.msra.mxu0 0
        %643 = vmatprep.subr.bf16.mxu0 0
        %644 = vmatpush1.bf16.msra.mxu0 0
        %645 = vmatprep.subr.bf16.mxu0 0
        %646 = vmatpush1.bf16.msra.mxu0 0
        %647 = vmatprep.subr.bf16.mxu0 0
        %648 = vmatpush1.bf16.msra.mxu0 0
        %649 = vmatprep.subr.bf16.mxu0 0
        %650 = vmatpush1.bf16.msra.mxu0 0
        %651 = vmatprep.subr.bf16.mxu0 0
        %652 = vmatpush1.bf16.msra.mxu0 0
        %653 = vmatprep.subr.bf16.mxu0 0
        %654 = vmatpush1.bf16.msra.mxu0 0
        %655 = vmatprep.subr.bf16.mxu0 0
        %656 = vmatpush1.bf16.msra.mxu0 0
        %657 = vmatprep.subr.bf16.mxu0 0
        %658 = vmatpush1.bf16.msra.mxu0 0
        %659 = vmatprep.mubr.bf16.mxu0 0
        %660 = vmatmul.mubr.bf16.gmra.mrb[0].mxu0 %v625
        %v661 = vpop.f32.mrb[0].mxu0
        %v662 = vadd.f32 0.0, %v661
        %v663 = vpop.f32.mrb[0].mxu0
        %v664 = vpop.f32.mrb[0].mxu0
        %v665 = vadd.f32 0.0, %v664
        %v666 = vpop.f32.mrb[0].mxu0
        %667 = vdwg.mxu0
        %v668 = vld [vmem:[%s393] sm:$0xf]
        %v669 = vld [vmem:[%s393 + $0x4] sm:$0xf]
        %vm670 = vcmp.gt.bf16.partialorder %v668, 0
        %vm671 = vcmp.gt.bf16.partialorder %v669, 0
        %673 = vset.pattern.permute.xlu0 0
        %674 = vperm.xlu0 %673, %v662
        %v675 = vpop.permute.xlu0 %674
        %678 = vset.pattern.permute.xlu0 0
        %679 = vperm.xlu0 %678, %v665
        %v680 = vpop.permute.xlu0 %679
        %v682 = vlaneseq
        %v683 = vshrl.u32 %v682, 7
        %v684 = vsub.s32 0, %v683
        %v685 = vrot.slane %v606, %v684
        %v686 = vadd.f32 %v675, %v685
        %v687 = vadd.f32 %v680, %v685
        %v688 = vmul.f32 %v686, 0.2
        %v689 = vmul.f32 %v687, 0.2
        %v690 = vmax.f32 %v686, %v688
        %v691 = vmax.f32 %v687, %v689
        %v692 = vsel %vm670, 65537, 0
        %v693 = vsel %vm671, 65537, 0
        %v694 = vunpack.c.l.b16 %v692
        %v695 = vunpack.c.l.b16 %v693
        %vm696 = vcmp.ne.s32.totalorder %v694, 0
        %vm697 = vcmp.ne.s32.totalorder %v695, 0
        %v698 = vsel %vm696, %v690, -1e+30
        %v699 = vsel %vm697, %v691, -1e+30
        %vm700 = vcmask 195584
        %v701 = vsel %vm700, %v698, -inf
        %702 = vmax.xlane.f32.xlu0 %v701
        %v703 = vpop.xlane.xlu0 %702
        %v704 = vsel %vm700, %v699, -inf
        %705 = vmax.xlane.f32.xlu0 %v704
        %v706 = vpop.xlane.xlu0 %705
        %vm707 = vcmp.gt.f32.partialorder %v703, -1e+29
        %vm708 = vcmp.gt.f32.partialorder %v706, -1e+29
        %v709 = vsub.f32 %v698, %v703
        %v710 = vsub.f32 %v699, %v706
        %v711 = vmul.f32 %v709, 1.442695
        %v712 = vpow.pop %v711
        %v713 = vmul.f32 %v710, 1.442695
        %v714 = vpow.pop %v713
        %v715 = vsel %vm700, %v712, 0.0
        %716 = vadd.xlane.f32.xlu0 %v715
        %v717 = vpop.xlane.xlu0 %716
        %v718 = vsel %vm700, %v714, 0.0
        %719 = vadd.xlane.f32.xlu0 %v718
        %v720 = vpop.xlane.xlu0 %719
        %v721 = vrcp.pop %v717
        %v722 = vrcp.pop %v720
        %v723 = vmul.f32 %v712, %v721
        %v724 = vmul.f32 %v714, %v722
        %v725 = vpack.c.bf16 %v724, %v723
        %v727 = vsel %vm700, %v725, 0
        %vm729 = vcmask 1043456
        %v731 = vsel %vm729, %v566, 0
        %733 = vmatprep.subr.bf16.mxu0 0
        %734 = vmatpush1.bf16.msra.mxu0 %v565
        %735 = vmatprep.subr.bf16.mxu0 0
        %736 = vmatpush1.bf16.msra.mxu0 %v731
        %737 = vmatprep.subr.bf16.mxu0 0
        %738 = vmatpush1.bf16.msra.mxu0 0
        %739 = vmatprep.subr.bf16.mxu0 0
        %740 = vmatpush1.bf16.msra.mxu0 0
        %741 = vmatprep.subr.bf16.mxu0 0
        %742 = vmatpush1.bf16.msra.mxu0 0
        %743 = vmatprep.subr.bf16.mxu0 0
        %744 = vmatpush1.bf16.msra.mxu0 0
        %745 = vmatprep.subr.bf16.mxu0 0
        %746 = vmatpush1.bf16.msra.mxu0 0
        %747 = vmatprep.subr.bf16.mxu0 0
        %748 = vmatpush1.bf16.msra.mxu0 0
        %749 = vmatprep.subr.bf16.mxu0 0
        %750 = vmatpush1.bf16.msra.mxu0 0
        %751 = vmatprep.subr.bf16.mxu0 0
        %752 = vmatpush1.bf16.msra.mxu0 0
        %753 = vmatprep.subr.bf16.mxu0 0
        %754 = vmatpush1.bf16.msra.mxu0 0
        %755 = vmatprep.subr.bf16.mxu0 0
        %756 = vmatpush1.bf16.msra.mxu0 0
        %757 = vmatprep.subr.bf16.mxu0 0
        %758 = vmatpush1.bf16.msra.mxu0 0
        %759 = vmatprep.subr.bf16.mxu0 0
        %760 = vmatpush1.bf16.msra.mxu0 0
        %761 = vmatprep.subr.bf16.mxu0 0
        %762 = vmatpush1.bf16.msra.mxu0 0
        %763 = vmatprep.subr.bf16.mxu0 0
        %764 = vmatpush1.bf16.msra.mxu0 0
        %765 = vmatprep.mubr.bf16.mxu0 0
        %766 = vmatmul.mubr.bf16.gmra.mrb[0].mxu0 %v727
        %v767 = vpop.f32.mrb[0].mxu0
        %v768 = vadd.f32 0.0, %v767
        %v769 = vpop.f32.mrb[0].mxu0
        %v770 = vpop.f32.mrb[0].mxu0
        %v771 = vadd.f32 0.0, %v770
        %v772 = vpop.f32.mrb[0].mxu0
        %773 = vdwg.mxu0
        %774 = vset.pattern.permute.xlu0 1
        %775 = vperm.xlu0 %774, %v662
        %v776 = vpop.permute.xlu0 %775
        %778 = vset.pattern.permute.xlu0 1
        %779 = vperm.xlu0 %778, %v665
        %v780 = vpop.permute.xlu0 %779
        %v782 = vlaneseq
        %v783 = vshrl.u32 %v782, 7
        %v784 = vsub.s32 1, %v783
        %v785 = vrot.slane %v606, %v784
        %v786 = vadd.f32 %v776, %v785
        %v787 = vadd.f32 %v780, %v785
        %v788 = vmul.f32 %v786, 0.2
        %v789 = vmul.f32 %v787, 0.2
        %v790 = vmax.f32 %v786, %v788
        %v791 = vmax.f32 %v787, %v789
        %v792 = vsel %vm696, %v790, -1e+30
        %v793 = vsel %vm697, %v791, -1e+30
        %v794 = vsel %vm700, %v792, -inf
        %795 = vmax.xlane.f32.xlu0 %v794
        %v796 = vpop.xlane.xlu0 %795
        %v797 = vsel %vm700, %v793, -inf
        %798 = vmax.xlane.f32.xlu0 %v797
        %v799 = vpop.xlane.xlu0 %798
        %v800 = vsub.f32 %v792, %v796
        %v801 = vsub.f32 %v793, %v799
        %v802 = vmul.f32 %v800, 1.442695
        %v803 = vpow.pop %v802
        %v804 = vmul.f32 %v801, 1.442695
        %v805 = vpow.pop %v804
        %v806 = vsel %vm700, %v803, 0.0
        %807 = vadd.xlane.f32.xlu0 %v806
        %v808 = vpop.xlane.xlu0 %807
        %v809 = vsel %vm700, %v805, 0.0
        %810 = vadd.xlane.f32.xlu0 %v809
        %v811 = vpop.xlane.xlu0 %810
        %v812 = vrcp.pop %v808
        %v813 = vrcp.pop %v811
        %v814 = vmul.f32 %v803, %v812
        %v815 = vmul.f32 %v805, %v813
        %v816 = vpack.c.bf16 %v815, %v814
        %819 = vrot.lane.b32.xlu0 %v565, 96
        %v820 = vpop.permute.xlu0 %819
        %821 = vrot.lane.b32.xlu0 %v566, 96
        %v822 = vpop.permute.xlu0 %821
        %v825 = vsel %vm700, %v816, 0
        %v828 = vsel %vm729, %v822, 0
        %830 = vmatprep.subr.bf16.mxu0 0
        %831 = vmatpush1.bf16.msra.mxu0 %v820
        %832 = vmatprep.subr.bf16.mxu0 0
        %833 = vmatpush1.bf16.msra.mxu0 %v828
        %834 = vmatprep.subr.bf16.mxu0 0
        %835 = vmatpush1.bf16.msra.mxu0 0
        %836 = vmatprep.subr.bf16.mxu0 0
        %837 = vmatpush1.bf16.msra.mxu0 0
        %838 = vmatprep.subr.bf16.mxu0 0
        %839 = vmatpush1.bf16.msra.mxu0 0
        %840 = vmatprep.subr.bf16.mxu0 0
        %841 = vmatpush1.bf16.msra.mxu0 0
        %842 = vmatprep.subr.bf16.mxu0 0
        %843 = vmatpush1.bf16.msra.mxu0 0
        %844 = vmatprep.subr.bf16.mxu0 0
        %845 = vmatpush1.bf16.msra.mxu0 0
        %846 = vmatprep.subr.bf16.mxu0 0
        %847 = vmatpush1.bf16.msra.mxu0 0
        %848 = vmatprep.subr.bf16.mxu0 0
        %849 = vmatpush1.bf16.msra.mxu0 0
        %850 = vmatprep.subr.bf16.mxu0 0
        %851 = vmatpush1.bf16.msra.mxu0 0
        %852 = vmatprep.subr.bf16.mxu0 0
        %853 = vmatpush1.bf16.msra.mxu0 0
        %854 = vmatprep.subr.bf16.mxu0 0
        %855 = vmatpush1.bf16.msra.mxu0 0
        %856 = vmatprep.subr.bf16.mxu0 0
        %857 = vmatpush1.bf16.msra.mxu0 0
        %858 = vmatprep.subr.bf16.mxu0 0
        %859 = vmatpush1.bf16.msra.mxu0 0
        %860 = vmatprep.subr.bf16.mxu0 0
        %861 = vmatpush1.bf16.msra.mxu0 0
        %862 = vmatprep.mubr.bf16.mxu0 0
        %863 = vmatmul.mubr.bf16.gmra.mrb[0].mxu0 %v825
        %v864 = vpop.f32.mrb[0].mxu0
        %v865 = vadd.f32 0.0, %v864
        %v866 = vpop.f32.mrb[0].mxu0
        %v867 = vpop.f32.mrb[0].mxu0
        %v868 = vadd.f32 0.0, %v867
        %v869 = vpop.f32.mrb[0].mxu0
        %870 = vdwg.mxu0
        %871 = vset.pattern.permute.xlu0 2
        %872 = vperm.xlu0 %871, %v662
        %v873 = vpop.permute.xlu0 %872
        %875 = vset.pattern.permute.xlu0 2
        %876 = vperm.xlu0 %875, %v665
        %v877 = vpop.permute.xlu0 %876
        %v879 = vlaneseq
        %v880 = vshrl.u32 %v879, 7
        %v881 = vsub.s32 2, %v880
        %v882 = vrot.slane %v606, %v881
        %v883 = vadd.f32 %v873, %v882
        %v884 = vadd.f32 %v877, %v882
        %v885 = vmul.f32 %v883, 0.2
        %v886 = vmul.f32 %v884, 0.2
        %v887 = vmax.f32 %v883, %v885
        %v888 = vmax.f32 %v884, %v886
        %v889 = vsel %vm696, %v887, -1e+30
        %v890 = vsel %vm697, %v888, -1e+30
        %v891 = vsel %vm700, %v889, -inf
        %892 = vmax.xlane.f32.xlu0 %v891
        %v893 = vpop.xlane.xlu0 %892
        %v894 = vsel %vm700, %v890, -inf
        %895 = vmax.xlane.f32.xlu0 %v894
        %v896 = vpop.xlane.xlu0 %895
        %v897 = vsub.f32 %v889, %v893
        %v898 = vsub.f32 %v890, %v896
        %v899 = vmul.f32 %v897, 1.442695
        %v900 = vpow.pop %v899
        %v901 = vmul.f32 %v898, 1.442695
        %v902 = vpow.pop %v901
        %v903 = vsel %vm700, %v900, 0.0
        %904 = vadd.xlane.f32.xlu0 %v903
        %v905 = vpop.xlane.xlu0 %904
        %v906 = vsel %vm700, %v902, 0.0
        %907 = vadd.xlane.f32.xlu0 %v906
        %v908 = vpop.xlane.xlu0 %907
        %v909 = vrcp.pop %v905
        %v910 = vrcp.pop %v908
        %v911 = vmul.f32 %v900, %v909
        %v912 = vmul.f32 %v902, %v910
        %v913 = vpack.c.bf16 %v912, %v911
        %914 = vrot.lane.b32.xlu0 %v565, 64
        %v915 = vpop.permute.xlu0 %914
        %916 = vrot.lane.b32.xlu0 %v566, 64
        %v917 = vpop.permute.xlu0 %916
        %v920 = vsel %vm700, %v913, 0
        %v923 = vsel %vm729, %v917, 0
        %925 = vmatprep.subr.bf16.mxu0 0
        %926 = vmatpush1.bf16.msra.mxu0 %v915
        %927 = vmatprep.subr.bf16.mxu0 0
        %928 = vmatpush1.bf16.msra.mxu0 %v923
        %929 = vmatprep.subr.bf16.mxu0 0
        %930 = vmatpush1.bf16.msra.mxu0 0
        %931 = vmatprep.subr.bf16.mxu0 0
        %932 = vmatpush1.bf16.msra.mxu0 0
        %933 = vmatprep.subr.bf16.mxu0 0
        %934 = vmatpush1.bf16.msra.mxu0 0
        %935 = vmatprep.subr.bf16.mxu0 0
        %936 = vmatpush1.bf16.msra.mxu0 0
        %937 = vmatprep.subr.bf16.mxu0 0
        %938 = vmatpush1.bf16.msra.mxu0 0
        %939 = vmatprep.subr.bf16.mxu0 0
        %940 = vmatpush1.bf16.msra.mxu0 0
        %941 = vmatprep.subr.bf16.mxu0 0
        %942 = vmatpush1.bf16.msra.mxu0 0
        %943 = vmatprep.subr.bf16.mxu0 0
        %944 = vmatpush1.bf16.msra.mxu0 0
        %945 = vmatprep.subr.bf16.mxu0 0
        %946 = vmatpush1.bf16.msra.mxu0 0
        %947 = vmatprep.subr.bf16.mxu0 0
        %948 = vmatpush1.bf16.msra.mxu0 0
        %949 = vmatprep.subr.bf16.mxu0 0
        %950 = vmatpush1.bf16.msra.mxu0 0
        %951 = vmatprep.subr.bf16.mxu0 0
        %952 = vmatpush1.bf16.msra.mxu0 0
        %953 = vmatprep.subr.bf16.mxu0 0
        %954 = vmatpush1.bf16.msra.mxu0 0
        %955 = vmatprep.subr.bf16.mxu0 0
        %956 = vmatpush1.bf16.msra.mxu0 0
        %957 = vmatprep.mubr.bf16.mxu0 0
        %958 = vmatmul.mubr.bf16.gmra.mrb[0].mxu0 %v920
        %v959 = vpop.f32.mrb[0].mxu0
        %v960 = vadd.f32 0.0, %v959
        %v961 = vpop.f32.mrb[0].mxu0
        %v962 = vpop.f32.mrb[0].mxu0
        %v963 = vadd.f32 0.0, %v962
        %v964 = vpop.f32.mrb[0].mxu0
        %965 = vdwg.mxu0
        %966 = vset.pattern.permute.xlu0 3
        %967 = vperm.xlu0 %966, %v662
        %v968 = vpop.permute.xlu0 %967
        %970 = vset.pattern.permute.xlu0 3
        %971 = vperm.xlu0 %970, %v665
        %v972 = vpop.permute.xlu0 %971
        %v974 = vlaneseq
        %v975 = vshrl.u32 %v974, 7
        %v976 = vsub.s32 3, %v975
        %v977 = vrot.slane %v606, %v976
        %v978 = vadd.f32 %v968, %v977
        %v979 = vadd.f32 %v972, %v977
        %v980 = vmul.f32 %v978, 0.2
        %v981 = vmul.f32 %v979, 0.2
        %v982 = vmax.f32 %v978, %v980
        %v983 = vmax.f32 %v979, %v981
        %v984 = vsel %vm696, %v982, -1e+30
        %v985 = vsel %vm697, %v983, -1e+30
        %v986 = vsel %vm700, %v984, -inf
        %987 = vmax.xlane.f32.xlu0 %v986
        %v988 = vpop.xlane.xlu0 %987
        %v989 = vsel %vm700, %v985, -inf
        %990 = vmax.xlane.f32.xlu0 %v989
        %v991 = vpop.xlane.xlu0 %990
        %v992 = vsub.f32 %v984, %v988
        %v993 = vsub.f32 %v985, %v991
        %v994 = vmul.f32 %v992, 1.442695
        %v995 = vpow.pop %v994
        %v996 = vmul.f32 %v993, 1.442695
        %v997 = vpow.pop %v996
        %v998 = vsel %vm700, %v995, 0.0
        %999 = vadd.xlane.f32.xlu0 %v998
        %v1000 = vpop.xlane.xlu0 %999
        %v1001 = vsel %vm700, %v997, 0.0
        %1002 = vadd.xlane.f32.xlu0 %v1001
        %v1003 = vpop.xlane.xlu0 %1002
        %v1004 = vrcp.pop %v1000
        %v1005 = vrcp.pop %v1003
        %v1006 = vmul.f32 %v995, %v1004
        %v1007 = vmul.f32 %v997, %v1005
        %v1008 = vpack.c.bf16 %v1007, %v1006
        %1009 = vrot.lane.b32.xlu0 %v565, 32
        %v1010 = vpop.permute.xlu0 %1009
        %1011 = vrot.lane.b32.xlu0 %v566, 32
        %v1012 = vpop.permute.xlu0 %1011
        %v1015 = vsel %vm700, %v1008, 0
        %v1018 = vsel %vm729, %v1012, 0
        %1020 = vmatprep.subr.bf16.mxu0 0
        %1021 = vmatpush1.bf16.msra.mxu0 %v1010
        %1022 = vmatprep.subr.bf16.mxu0 0
        %1023 = vmatpush1.bf16.msra.mxu0 %v1018
        %1024 = vmatprep.subr.bf16.mxu0 0
        %1025 = vmatpush1.bf16.msra.mxu0 0
        %1026 = vmatprep.subr.bf16.mxu0 0
        %1027 = vmatpush1.bf16.msra.mxu0 0
        %1028 = vmatprep.subr.bf16.mxu0 0
        %1029 = vmatpush1.bf16.msra.mxu0 0
        %1030 = vmatprep.subr.bf16.mxu0 0
        %1031 = vmatpush1.bf16.msra.mxu0 0
        %1032 = vmatprep.subr.bf16.mxu0 0
        %1033 = vmatpush1.bf16.msra.mxu0 0
        %1034 = vmatprep.subr.bf16.mxu0 0
        %1035 = vmatpush1.bf16.msra.mxu0 0
        %1036 = vmatprep.subr.bf16.mxu0 0
        %1037 = vmatpush1.bf16.msra.mxu0 0
        %1038 = vmatprep.subr.bf16.mxu0 0
        %1039 = vmatpush1.bf16.msra.mxu0 0
        %1040 = vmatprep.subr.bf16.mxu0 0
        %1041 = vmatpush1.bf16.msra.mxu0 0
        %1042 = vmatprep.subr.bf16.mxu0 0
        %1043 = vmatpush1.bf16.msra.mxu0 0
        %1044 = vmatprep.subr.bf16.mxu0 0
        %1045 = vmatpush1.bf16.msra.mxu0 0
        %1046 = vmatprep.subr.bf16.mxu0 0
        %1047 = vmatpush1.bf16.msra.mxu0 0
        %1048 = vmatprep.subr.bf16.mxu0 0
        %1049 = vmatpush1.bf16.msra.mxu0 0
        %1050 = vmatprep.subr.bf16.mxu0 0
        %1051 = vmatpush1.bf16.msra.mxu0 0
        %1052 = vmatprep.mubr.bf16.mxu0 0
        %1053 = vmatmul.mubr.bf16.gmra.mrb[0].mxu0 %v1015
        %v1054 = vpop.f32.mrb[0].mxu0
        %v1055 = vadd.f32 0.0, %v1054
        %v1056 = vpop.f32.mrb[0].mxu0
        %v1057 = vpop.f32.mrb[0].mxu0
        %v1058 = vadd.f32 0.0, %v1057
        %v1059 = vpop.f32.mrb[0].mxu0
        %1060 = vdwg.mxu0
        %1063 = vrot.lane.b32.xlu0 %v865, 32
        %v1064 = vpop.permute.xlu0 %1063
        %1065 = vrot.lane.b32.xlu0 %v868, 32
        %v1066 = vpop.permute.xlu0 %1065
        %1071 = vrot.lane.b32.xlu0 %v960, 64
        %v1072 = vpop.permute.xlu0 %1071
        %1073 = vrot.lane.b32.xlu0 %v963, 64
        %v1074 = vpop.permute.xlu0 %1073
        %1079 = vrot.lane.b32.xlu0 %v1055, 96
        %v1080 = vpop.permute.xlu0 %1079
        %1081 = vrot.lane.b32.xlu0 %v1058, 96
        %v1082 = vpop.permute.xlu0 %1081
        %vm1085 = vcmask 261120
        %v1086 = vsel %vm1085, %v768, %v1064
        %v1087 = vsel %vm1085, %v771, %v1066
        %vm1088 = vcmask 523264
        %v1089 = vsel %vm1088, %v1086, %v1072
        %v1090 = vsel %vm1088, %v1087, %v1074
        %vm1091 = vcmask 785408
        %v1092 = vsel %vm1091, %v1089, %v1080
        %v1093 = vsel %vm1091, %v1090, %v1082
        %v1094 = vld [vmem:[#allocation2] sm:$0xff]
        %v1095 = vld [vmem:[#allocation2 + $0x8] sm:$0xff]
        %v1096 = vsel %vm707, 1, 0
        %v1097 = vsel %vm708, 1, 0
        %vm1098 = vcmp.eq.s32.totalorder %v1096, 1
        %vm1099 = vcmp.eq.s32.totalorder %v1097, 1
        %v1100 = vsel %vm1098, %v1092, 0.0
        %v1101 = vsel %vm1099, %v1093, 0.0
        %v1102 = vadd.f32 %v1094, %v1100
        %v1103 = vadd.f32 %v1095, %v1101
        %1104 = vst [vmem:[#allocation2] sm:$0xff] %v1102
        %1105 = vst [vmem:[#allocation2 + $0x8] sm:$0xff] %v1103
        %p1106 = scmp.eq.s32.totalorder %s26, 1
        // Predicated region
        $region61: #{tpu_custom_call.1} parent=55 // pred_check
          %p1107 = pneg %p1106
        $region62: #{tpu_custom_call.1} parent=55 // pred_check_branch
          %1109 = sbr.rel (%p1107) target = $region64
        $region63: #{tpu_custom_call.1} parent=55 // pred_region
          %v1110 = vld [vmem:[#allocation2] sm:$0xff]
          %v1111 = vld [vmem:[#allocation2 + $0x8] sm:$0xff]
          %v1112 = vld [vmem:[%s7] sm:$0x1]
          %v1114 = vlaneseq
          %v1115 = vshrl.u32 %v1114, 7
          %v1116 = vsub.s32 0, %v1115
          %v1117 = vrot.slane %v1112, %v1116
          %v1119 = vmul.f32 %v1110, %v1117
          %v1120 = vmul.f32 %v1111, %v1117
          %v1121 = vld [vmem:[%s8] sm:$0x1]
          %v1123 = vlaneseq
          %v1124 = vshrl.u32 %v1123, 7
          %v1125 = vsub.s32 0, %v1124
          %v1126 = vrot.slane %v1121, %v1125
          %v1128 = vadd.f32 %v1119, %v1126
          %v1129 = vadd.f32 %v1120, %v1126
          %vm1130 = vcmp.gt.f32.partialorder %v1128, 0.0
          %vm1131 = vcmp.gt.f32.partialorder %v1129, 0.0
          %v1132 = vmin.f32 %v1128, 0.0
          %v1133 = vmin.f32 %v1129, 0.0
          %v1134 = vmul.f32 %v1132, 1.442695
          %v1135 = vpow.pop %v1134
          %v1136 = vmul.f32 %v1133, 1.442695
          %v1137 = vpow.pop %v1136
          %v1138 = vsub.f32 %v1135, 1.0
          %v1139 = vsub.f32 %v1137, 1.0
          %v1140 = vsel %vm1130, %v1128, %v1138
          %v1141 = vsel %vm1131, %v1129, %v1139
          %v1142 = vpack.c.bf16 %v1141, %v1140
          %v1144 = vunpack.c.l.b16 %v1142
          %v1145 = vunpack.c.h.b16 %v1142
          %v1146 = vpack.c.b16 %v1144, %v1144
          %v1147 = vpack.c.b16 %v1145, %v1145
          %1150 = vst [vmem:[#allocation3] sm:$0xf] %v1146
          %1151 = vst [vmem:[#allocation3 + $0x4] sm:$0xf] %v1147
        $region64: #{tpu_custom_call.1} parent=55 // pred_fallthru
          _
        // Predicated region
        $region65: #{tpu_custom_call.1} parent=55 // pred_check
          %p1152 = pneg %p262
        $region66: #{tpu_custom_call.1} parent=55 // pred_check_branch
          %1154 = sbr.rel (%p1152) target = $region68
        $region67: #{tpu_custom_call.1} parent=55 // pred_region
          %s1155 = smul.u32 2, %s25
          %s1157 = ssub.s32 128, 128
          %1158 = vsyncadd [#allocation4], %s1157
          %s1159 = smul.addr %s1155, 64
          %s1160 = scalar_lea.hbm %s9, %s1159
          %s1161 = sshll.u32 [#allocation3], 4
          %s1162 = int_to_ptr.vmem [resolvable:$true] %s1161
          %1167 = dma.vmem_to_hbm [thread:$0]  %s1162, 128, %s1160, [#allocation4], 64, 64, 4
        $region68: #{tpu_custom_call.1} parent=55 // pred_fallthru
          _
        // Predicated region
        $region69: #{tpu_custom_call.1} parent=55 // pred_check
          %p1168 = pneg %p262
        $region70: #{tpu_custom_call.1} parent=55 // pred_check_branch
          %1170 = sbr.rel (%p1168) target = $region72
        $region71: #{tpu_custom_call.1} parent=55 // pred_region
          %1171 = dma.done [#allocation4], 128
        $region72: #{tpu_custom_call.1} parent=55 // pred_fallthru
          _
      $region56: #{tpu_custom_call.1} parent=5 // pred_fallthru
        _
      %p1172 = scmp.le.s32.totalorder 2, %s16
      // Predicated region
      $region73: #{tpu_custom_call.1} parent=5 // pred_check
        %p1173 = pneg %p1172
      $region74: #{tpu_custom_call.1} parent=5 // pred_check_branch
        %1175 = sbr.rel (%p1173) target = $region76
      $region75: #{tpu_custom_call.1} parent=5 // pred_region
        %s1176 = ssub.s32 %s16, 2
      $region76: #{tpu_custom_call.1} parent=5 // pred_fallthru
        _
    $region6: #{tpu_custom_call.1} parent=1 // loop_footer
      %s20 = sadd.s32 1, %s16
    $region7: #{tpu_custom_call.1} parent=1 // loop_footer_branch
      %15 = sbr.rel target = $region3
    $region8: #{tpu_custom_call.1} parent=1 // loop_exit
      _
    %1177 = vsyncpa [#allocation4], 1
    %s1178 = scalar_lea.sflag [#allocation4], 1
    %1179 = vsyncpa %s1178, 1

</llo_original>
